<compile_context>
chip_gen: v6e
topology: v6e:2x2x1
jax: 0.10.0
libtpu: 0.0.40
codegen_flags: <defaults>
</compile_context>

<pallas_src>
import functools

import jax
import jax.numpy as jnp
from jax import lax
from jax.experimental import pallas as pl
from jax.experimental.pallas import tpu as pltpu

EV_TO_KJ_PER_MOL = 96.485


def _round_up(x, m):
    return ((x + m - 1) // m) * m


# ----------------------------------------------------------------------------
# Static packing of MultiLinearLayer params into one bf16 block-diagonal slab
# ----------------------------------------------------------------------------
def pack_params(params, n_models, n_cvs, features):
    """Pack per-model MLP params into one tile-aligned bf16 (R, F) slab.

    Every piece starts at a multiple of 16 rows (bf16 sublane tile), so the
    static row slices inside the kernel never split a tile.
    """
    assert len(features) == 4 and len(params) == 5
    assert n_models >= 2, "unbiased model variance needs n_models >= 2"
    f0, f1, f2, f3 = features
    two = 2 * n_cvs
    F = _round_up(max(n_models * f for f in features), 128)
    CIN = max(16, _round_up(two, 16))      # live contraction rows of layer 1
    NPAD = 16                              # padded model rows (bf16 tile)
    OUTW = 128                             # lane-dense output row width
    assert n_models <= NPAD and 1 + n_cvs <= OUTW

    (w1, b1), (w2, b2), (w3, b3), (w4, b4), (w5, b5) = [
        (jnp.asarray(w, jnp.float32), jnp.asarray(b, jnp.float32))
        for (w, b) in params
    ]

    def blockdiag(w, fin, fout):
        out = jnp.zeros((F, F), jnp.float32)
        for m in range(n_models):
            out = out.at[m * fin:(m + 1) * fin, m * fout:(m + 1) * fout].set(w[m])
        return out

    def packed_bias(b, fout):
        out = jnp.zeros((F,), jnp.float32)
        for m in range(n_models):
            out = out.at[m * fout:(m + 1) * fout].set(b[m, 0, :])
        return out

    # layer 1: shared (cos,sin) input -> per-model f0 outputs; only the live
    # 2*n_cvs contraction rows are stored (plus tile padding to CIN rows).
    w1p = jnp.zeros((CIN, F), jnp.float32)
    for m in range(n_models):
        w1p = w1p.at[:two, m * f0:(m + 1) * f0].set(w1[m])

    bias_blk = jnp.zeros((16, F), jnp.float32)
    bias_blk = bias_blk.at[0].set(packed_bias(b1, f0))
    bias_blk = bias_blk.at[1].set(packed_bias(b2, f1))
    bias_blk = bias_blk.at[2].set(packed_bias(b3, f2))
    bias_blk = bias_blk.at[3].set(packed_bias(b4, f3))

    w2p = blockdiag(w2, f0, f1)
    w3p = blockdiag(w3, f1, f2)
    w4p = blockdiag(w4, f2, f3)

    # readout weights stored transposed: row m = w5_m^T in model-m's lane
    # block; doubles as the backward gradient seed.  b5 sits in lane 0.
    w5pt = jnp.zeros((NPAD, F), jnp.float32)
    b5blk = jnp.zeros((NPAD, F), jnp.float32)
    for m in range(n_models):
        w5pt = w5pt.at[m, m * f3:(m + 1) * f3].set(w5[m, :, 0])
        b5blk = b5blk.at[m, 0].set(b5[m, 0, 0])

    pieces = [w1p, bias_blk, w2p, w3p, w4p, w5pt, b5blk]
    offs, r = [], 0
    for p in pieces:
        offs.append(r)
        r += p.shape[0]
    slab = jnp.concatenate(pieces, axis=0).astype(jnp.bfloat16)   # (R, F) bf16

    off_w1, off_bias, off_w2, off_w3, off_w4, off_w5t, off_b5 = offs
    cfg = dict(
        n_models=n_models, n_cvs=n_cvs, F=F, CIN=CIN, NPAD=NPAD, OUTW=OUTW,
        R=r,
        off_w1=off_w1, off_bias=off_bias, off_w2=off_w2, off_w3=off_w3,
        off_w4=off_w4, off_w5t=off_w5t, off_b5=off_b5,
        # HBM->VMEM DMA pieces (row_offset, n_rows); started up front, each
        # waited on right before its first use so the DMA hides behind compute
        dma_pieces=((off_w1, CIN + 16), (off_w2, F), (off_w3, F),
                    (off_w4, F), (off_w5t, 2 * NPAD)),
    )
    return slab, cfg


# ----------------------------------------------------------------------------
# Pallas kernel: packed MLP fwd + analytic bwd + fused uncertainty epilogue
# ----------------------------------------------------------------------------
def _bias_mlp_kernel(cfg, boost, e0, e1, t_ref, slab_hbm, out_ref, wbuf, sems):
    n_models, n_cvs = cfg["n_models"], cfg["n_cvs"]
    F, CIN, NPAD, OUTW = cfg["F"], cfg["CIN"], cfg["NPAD"], cfg["OUTW"]
    o1, ob = cfg["off_w1"], cfg["off_bias"]
    o2, o3, o4 = cfg["off_w2"], cfg["off_w3"], cfg["off_w4"]
    o5, ob5 = cfg["off_w5t"], cfg["off_b5"]
    bf16, f32 = jnp.bfloat16, jnp.float32

    # Kick off all weight-piece DMAs; only piece 0 (~16 KB) gates layer 1.
    copies = []
    for i, (r0, nr) in enumerate(cfg["dma_pieces"]):
        cp = pltpu.make_async_copy(slab_hbm.at[pl.ds(r0, nr), :],
                                   wbuf.at[pl.ds(r0, nr), :],
                                   sems.at[i])
        cp.start()
        copies.append(cp)

    def mm(a, b):      # A @ B on the MXU, f32 accumulation
        return jnp.dot(a.astype(bf16), b, preferred_element_type=f32)

    def mm_nt(a, b):   # A @ B^T (contraction on both last dims), f32 acc
        return lax.dot_general(a.astype(bf16), b, (((1,), (1,)), ((), ())),
                               preferred_element_type=f32)

    t = t_ref[...]                                     # (1, CIN) f32 [cos|sin|0..]

    # ---- forward: all models in one packed chain (dropout = identity) ----
    copies[0].wait()
    w1 = wbuf[o1:o1 + CIN, :]                          # (CIN, F) bf16
    bias = wbuf[ob:ob + 16, :].astype(f32)             # rows 0..3 = b1..b4
    a1 = jnp.tanh(mm(t, w1) + bias[0:1, :])            # (1, F)
    copies[1].wait()
    w2 = wbuf[o2:o2 + F, :]
    a2 = jnp.tanh(mm(a1, w2) + bias[1:2, :])
    copies[2].wait()
    w3 = wbuf[o3:o3 + F, :]
    a3 = jnp.tanh(mm(a2, w3) + bias[2:3, :])
    copies[3].wait()
    w4 = wbuf[o4:o4 + F, :]
    a4 = jnp.tanh(mm(a3, w4) + bias[3:4, :])
    copies[4].wait()
    w5t = wbuf[o5:o5 + NPAD, :].astype(f32)            # row m = w5_m^T
    b5 = wbuf[ob5:ob5 + NPAD, :].astype(f32)[:, 0:1]   # (NPAD, 1)

    # per-model raw energy (row m) = a4_m . w5_m + b5_m; padded rows stay 0
    e_m = jnp.sum(w5t * a4, axis=-1, keepdims=True) + b5          # (NPAD, 1)

    # ---- analytic backward, packed (block-diagonal => model rows never mix);
    #      reuses the forward weights via A @ W^T — no transposed copies ----
    g4 = w5t * (1.0 - a4 * a4)                                    # (NPAD, F)
    g3 = mm_nt(g4, w4) * (1.0 - a3 * a3)
    g2 = mm_nt(g3, w3) * (1.0 - a2 * a2)
    g1 = mm_nt(g2, w2) * (1.0 - a1 * a1)
    gt = mm_nt(g1, w1)                                            # (NPAD, CIN)

    # chain rule through [cos(cvs), sin(cvs)]; boost applied BEFORE the
    # variance/switch exactly like the torch reference (kJ/mol units).
    cos_t = t[:, 0:n_cvs]
    sin_t = t[:, n_cvs:2 * n_cvs]
    dedcvs = (gt[:, 0:n_cvs] * (-sin_t)
              + gt[:, n_cvs:2 * n_cvs] * cos_t) * boost           # (NPAD, n_cvs)

    # ---- fused epilogue: model mean / unbiased variance, switch, output ----
    # Padded rows are exact zeros, so sums over NPAD rows == sums over the
    # n_models live rows; torch.var default (ddof=1) via sum / sum-of-squares.
    sum_f = jnp.sum(dedcvs, axis=0, keepdims=True)                # (1, n_cvs)
    sum_f2 = jnp.sum(dedcvs * dedcvs, axis=0, keepdims=True)
    mean_f = sum_f / n_models
    var_f = (sum_f2 - n_models * mean_f * mean_f) / (n_models - 1)
    model_div = jnp.sqrt(jnp.sum(var_f, axis=-1, keepdims=True) / n_cvs)  # (1,1)

    # torch.heaviside(floor(iswitch), 0.5*(1+cos(pi*(1-iswitch)))) semantics
    iswitch = (e1 - model_div) / (e1 - e0)
    fl = jnp.floor(iswitch)
    smooth = 0.5 * (1.0 + jnp.cos(jnp.pi * (1.0 - iswitch)))
    sigma = jnp.where(fl > 0, 1.0, jnp.where(fl < 0, 0.0, smooth))        # (1,1)

    mean_e = jnp.sum(e_m, axis=0, keepdims=True) * (boost / n_models)     # (1,1)

    # single lane-dense (1, 128) store: [mean_E*sigma | mean_F*sigma | 0 ...]
    pad = jnp.zeros((1, OUTW - 1 - n_cvs), f32)
    out_ref[...] = jnp.concatenate([mean_e, mean_f, pad], axis=-1) * sigma


def mlp_bias_outputs(t_pad, slab, cfg, boost, e0, e1):
    """Returns (mean_energy*sigma  (scalar),  mean dE/dcvs * sigma  (n_cvs,))."""
    OUTW, R, F = cfg["OUTW"], cfg["R"], cfg["F"]
    n_pieces = len(cfg["dma_pieces"])
    vmem = pl.BlockSpec(memory_space=pltpu.MemorySpace.VMEM)
    out = pl.pallas_call(
        functools.partial(_bias_mlp_kernel, cfg, boost, e0, e1),
        out_shape=jax.ShapeDtypeStruct((1, OUTW), jnp.float32),
        in_specs=[vmem,                                  # torsion features
                  pl.BlockSpec(memory_space=pl.ANY)],    # weight slab (HBM)
        out_specs=vmem,
        scratch_shapes=[pltpu.VMEM((R, F), jnp.bfloat16),
                        pltpu.SemaphoreType.DMA((n_pieces,))],
    )(t_pad, slab)
    energy = out[0, 0]
    mean_force = out[0, 1:1 + cfg["n_cvs"]]
    return energy, mean_force


# ----------------------------------------------------------------------------
# Glue: dihedral geometry, force scatter (plain JAX)
# ----------------------------------------------------------------------------
def dihedral_angle(p):
    """p: (4, 3) -> scalar dihedral angle (standard atan2 convention)."""
    b0 = p[1] - p[0]
    b1 = p[2] - p[1]
    b2 = p[3] - p[2]
    n1 = jnp.cross(b0, b1)
    n2 = jnp.cross(b1, b2)
    b1n = b1 / jnp.sqrt(jnp.sum(b1 * b1))
    m1 = jnp.cross(n1, b1n)
    return jnp.arctan2(jnp.dot(m1, n2), jnp.dot(n1, n2))


def dihedral_bias_forward(positions, colvar_idx, slab, cfg, e0=2.0, e1=3.0):
    n_cvs, CIN = cfg["n_cvs"], cfg["CIN"]
    boost = 1.0 * EV_TO_KJ_PER_MOL
    flat_idx = colvar_idx.reshape(-1)

    # selected positions -> (n_cvs, 4, 3); angles and their position gradients
    sel = positions[flat_idx].reshape(-1, 4, 3)
    cvs = jax.vmap(dihedral_angle)(sel)                        # (n_cvs,)
    dcvs_dx = jax.vmap(jax.grad(dihedral_angle))(sel)          # (n_cvs, 4, 3)

    # torsion features [cos, sin], zero-padded to the kernel's contraction rows
    feats = jnp.concatenate([jnp.cos(cvs), jnp.sin(cvs)], axis=-1).astype(jnp.float32)
    t_pad = jnp.zeros((1, CIN), jnp.float32).at[0, :2 * n_cvs].set(feats)

    # hot path: the Pallas kernel returns mean energy and mean dE/dcvs over the
    # models, both already scaled by the uncertainty switch sigma and the boost
    energy, mf = mlp_bias_outputs(t_pad, slab, cfg, boost, e0, e1)

    # scatter onto atoms (index_add semantics); +dE/dcvs sign matches the
    # reference forward() (negation only appears in the training helpers)
    contrib = (mf.reshape(-1, 1, 1) * dcvs_dx).reshape(-1, 3)
    forces = jnp.zeros_like(positions).at[flat_idx].add(contrib)
    return energy, forces


# ----------------------------------------------------------------------------
# Deterministic parameter init (MultiLinearLayer: kaiming_uniform_(a=sqrt(5)))
# ----------------------------------------------------------------------------
def init_params(key, n_models, n_cvs, features):
    sizes = [2 * n_cvs] + list(features) + [1]
    params = []
    for i in range(len(sizes) - 1):
        size_in, size_out = sizes[i], sizes[i + 1]
        key, sub = jax.random.split(key)
        # torch kaiming_uniform_(a=sqrt(5)) on a 3-D tensor -> bound = 1/sqrt(fan_in)
        fan_in = size_in * size_out
        bound = 1.0 / jnp.sqrt(jnp.asarray(fan_in, jnp.float32))
        w = jax.random.uniform(sub, (n_models, size_in, size_out),
                               jnp.float32, -bound, bound)
        b = jnp.zeros((n_models, 1, size_out), jnp.float32)
        params.append((w, b))
    return params


if __name__ == "__main__":
    n_models = 4
    n_cvs = 2
    features = [64, 64, 64, 64]
    nparticles = 10

    key = jax.random.PRNGKey(0)
    k_pos, k_par = jax.random.split(key)

    positions = jax.random.normal(k_pos, (nparticles, 3), jnp.float32)
    colvar_idx = jnp.array([[0, 1, 2, 3],
                            [4, 5, 6, 7]], dtype=jnp.int32)      # (n_cvs, 4)
    params = init_params(k_par, n_models, n_cvs, features)

    # static one-time packing into the bf16 block-diagonal slab
    slab, cfg = pack_params(params, n_models, n_cvs, features)

    fwd = jax.jit(lambda pos, w: dihedral_bias_forward(
        pos, colvar_idx, w, cfg, e0=2.0, e1=3.0))

    energy, forces = fwd(positions, slab)
    jax.block_until_ready((energy, forces))

    assert energy.shape == ()
    assert forces.shape == (nparticles, 3)
    assert bool(jnp.isfinite(energy)) and bool(jnp.all(jnp.isfinite(forces)))
    print("KERNEL_OK")
</pallas_src>

<mosaic_0001>
module attributes {stable_mosaic.version = 11 : i64} {
  func.func @_bias_mlp_kernel(%arg0: memref<1x16xf32, #tpu.memory_space<vmem>>, %arg1: memref<832x256xbf16, #tpu.memory_space<any>>, %arg2: memref<1x128xf32, #tpu.memory_space<vmem>>, %arg3: memref<832x256xbf16, #tpu.memory_space<vmem>>, %arg4: memref<5x!tpu.dma_semaphore, #tpu.memory_space<semaphore_mem>>) attributes {dimension_semantics = [], scalar_prefetch = 0 : i64, scratch_operands = 2 : i64, tpu.core_type = #tpu.core_type<tc>} {
    %c0_i32 = arith.constant 0 : i32
    %c0_i32_0 = arith.constant 0 : i32
    %c0_i32_1 = arith.constant 0 : i32
    %0 = tpu.memref_slice %arg1[%c0_i32_0, %c0_i32_1] : memref<832x256xbf16, #tpu.memory_space<any>> -> memref<32x256xbf16, #tpu.memory_space<any>>
    %c0_i32_2 = arith.constant 0 : i32
    %c0_i32_3 = arith.constant 0 : i32
    %1 = tpu.memref_slice %arg3[%c0_i32_2, %c0_i32_3] : memref<832x256xbf16, #tpu.memory_space<vmem>> -> memref<32x256xbf16, #tpu.memory_space<vmem>>
    %2 = tpu.memref_slice %arg4[%c0_i32] : memref<5x!tpu.dma_semaphore, #tpu.memory_space<semaphore_mem>> -> memref<1x!tpu.dma_semaphore, #tpu.memory_space<semaphore_mem>>
    %3 = tpu.memref_squeeze %2 : memref<1x!tpu.dma_semaphore, #tpu.memory_space<semaphore_mem>> -> memref<!tpu.dma_semaphore, #tpu.memory_space<semaphore_mem>>
    tpu.enqueue_dma source(%0 : memref<32x256xbf16, #tpu.memory_space<any>>) target(%1 : memref<32x256xbf16, #tpu.memory_space<vmem>>) target_semaphore(%3 : memref<!tpu.dma_semaphore, #tpu.memory_space<semaphore_mem>>)
    %c1_i32 = arith.constant 1 : i32
    %c32_i32 = arith.constant 32 : i32
    %c0_i32_4 = arith.constant 0 : i32
    %4 = tpu.memref_slice %arg1[%c32_i32, %c0_i32_4] : memref<832x256xbf16, #tpu.memory_space<any>> -> memref<256x256xbf16, #tpu.memory_space<any>>
    %c32_i32_5 = arith.constant 32 : i32
    %c0_i32_6 = arith.constant 0 : i32
    %5 = tpu.memref_slice %arg3[%c32_i32_5, %c0_i32_6] : memref<832x256xbf16, #tpu.memory_space<vmem>> -> memref<256x256xbf16, #tpu.memory_space<vmem>>
    %6 = tpu.memref_slice %arg4[%c1_i32] : memref<5x!tpu.dma_semaphore, #tpu.memory_space<semaphore_mem>> -> memref<1x!tpu.dma_semaphore, #tpu.memory_space<semaphore_mem>>
    %7 = tpu.memref_squeeze %6 : memref<1x!tpu.dma_semaphore, #tpu.memory_space<semaphore_mem>> -> memref<!tpu.dma_semaphore, #tpu.memory_space<semaphore_mem>>
    tpu.enqueue_dma source(%4 : memref<256x256xbf16, #tpu.memory_space<any>>) target(%5 : memref<256x256xbf16, #tpu.memory_space<vmem>>) target_semaphore(%7 : memref<!tpu.dma_semaphore, #tpu.memory_space<semaphore_mem>>)
    %c2_i32 = arith.constant 2 : i32
    %c288_i32 = arith.constant 288 : i32
    %c0_i32_7 = arith.constant 0 : i32
    %8 = tpu.memref_slice %arg1[%c288_i32, %c0_i32_7] : memref<832x256xbf16, #tpu.memory_space<any>> -> memref<256x256xbf16, #tpu.memory_space<any>>
    %c288_i32_8 = arith.constant 288 : i32
    %c0_i32_9 = arith.constant 0 : i32
    %9 = tpu.memref_slice %arg3[%c288_i32_8, %c0_i32_9] : memref<832x256xbf16, #tpu.memory_space<vmem>> -> memref<256x256xbf16, #tpu.memory_space<vmem>>
    %10 = tpu.memref_slice %arg4[%c2_i32] : memref<5x!tpu.dma_semaphore, #tpu.memory_space<semaphore_mem>> -> memref<1x!tpu.dma_semaphore, #tpu.memory_space<semaphore_mem>>
    %11 = tpu.memref_squeeze %10 : memref<1x!tpu.dma_semaphore, #tpu.memory_space<semaphore_mem>> -> memref<!tpu.dma_semaphore, #tpu.memory_space<semaphore_mem>>
    tpu.enqueue_dma source(%8 : memref<256x256xbf16, #tpu.memory_space<any>>) target(%9 : memref<256x256xbf16, #tpu.memory_space<vmem>>) target_semaphore(%11 : memref<!tpu.dma_semaphore, #tpu.memory_space<semaphore_mem>>)
    %c3_i32 = arith.constant 3 : i32
    %c544_i32 = arith.constant 544 : i32
    %c0_i32_10 = arith.constant 0 : i32
    %12 = tpu.memref_slice %arg1[%c544_i32, %c0_i32_10] : memref<832x256xbf16, #tpu.memory_space<any>> -> memref<256x256xbf16, #tpu.memory_space<any>>
    %c544_i32_11 = arith.constant 544 : i32
    %c0_i32_12 = arith.constant 0 : i32
    %13 = tpu.memref_slice %arg3[%c544_i32_11, %c0_i32_12] : memref<832x256xbf16, #tpu.memory_space<vmem>> -> memref<256x256xbf16, #tpu.memory_space<vmem>>
    %14 = tpu.memref_slice %arg4[%c3_i32] : memref<5x!tpu.dma_semaphore, #tpu.memory_space<semaphore_mem>> -> memref<1x!tpu.dma_semaphore, #tpu.memory_space<semaphore_mem>>
    %15 = tpu.memref_squeeze %14 : memref<1x!tpu.dma_semaphore, #tpu.memory_space<semaphore_mem>> -> memref<!tpu.dma_semaphore, #tpu.memory_space<semaphore_mem>>
    tpu.enqueue_dma source(%12 : memref<256x256xbf16, #tpu.memory_space<any>>) target(%13 : memref<256x256xbf16, #tpu.memory_space<vmem>>) target_semaphore(%15 : memref<!tpu.dma_semaphore, #tpu.memory_space<semaphore_mem>>)
    %c4_i32 = arith.constant 4 : i32
    %c800_i32 = arith.constant 800 : i32
    %c0_i32_13 = arith.constant 0 : i32
    %16 = tpu.memref_slice %arg1[%c800_i32, %c0_i32_13] : memref<832x256xbf16, #tpu.memory_space<any>> -> memref<32x256xbf16, #tpu.memory_space<any>>
    %c800_i32_14 = arith.constant 800 : i32
    %c0_i32_15 = arith.constant 0 : i32
    %17 = tpu.memref_slice %arg3[%c800_i32_14, %c0_i32_15] : memref<832x256xbf16, #tpu.memory_space<vmem>> -> memref<32x256xbf16, #tpu.memory_space<vmem>>
    %18 = tpu.memref_slice %arg4[%c4_i32] : memref<5x!tpu.dma_semaphore, #tpu.memory_space<semaphore_mem>> -> memref<1x!tpu.dma_semaphore, #tpu.memory_space<semaphore_mem>>
    %19 = tpu.memref_squeeze %18 : memref<1x!tpu.dma_semaphore, #tpu.memory_space<semaphore_mem>> -> memref<!tpu.dma_semaphore, #tpu.memory_space<semaphore_mem>>
    tpu.enqueue_dma source(%16 : memref<32x256xbf16, #tpu.memory_space<any>>) target(%17 : memref<32x256xbf16, #tpu.memory_space<vmem>>) target_semaphore(%19 : memref<!tpu.dma_semaphore, #tpu.memory_space<semaphore_mem>>)
    %c0 = arith.constant 0 : index
    %c0_16 = arith.constant 0 : index
    %20 = vector.load %arg0[%c0, %c0_16] : memref<1x16xf32, #tpu.memory_space<vmem>>, vector<1x16xf32>
    %c0_i32_17 = arith.constant 0 : i32
    %c0_i32_18 = arith.constant 0 : i32
    %c0_i32_19 = arith.constant 0 : i32
    %21 = tpu.memref_slice %arg1[%c0_i32_18, %c0_i32_19] : memref<832x256xbf16, #tpu.memory_space<any>> -> memref<32x256xbf16, #tpu.memory_space<any>>
    %c0_i32_20 = arith.constant 0 : i32
    %c0_i32_21 = arith.constant 0 : i32
    %22 = tpu.memref_slice %arg3[%c0_i32_20, %c0_i32_21] : memref<832x256xbf16, #tpu.memory_space<vmem>> -> memref<32x256xbf16, #tpu.memory_space<vmem>>
    %23 = tpu.memref_slice %arg4[%c0_i32_17] : memref<5x!tpu.dma_semaphore, #tpu.memory_space<semaphore_mem>> -> memref<1x!tpu.dma_semaphore, #tpu.memory_space<semaphore_mem>>
    %24 = tpu.memref_squeeze %23 : memref<1x!tpu.dma_semaphore, #tpu.memory_space<semaphore_mem>> -> memref<!tpu.dma_semaphore, #tpu.memory_space<semaphore_mem>>
    tpu.wait_dma2 semaphore(%24 : memref<!tpu.dma_semaphore, #tpu.memory_space<semaphore_mem>>) src(%21 : memref<32x256xbf16, #tpu.memory_space<any>>) dst(%22 : memref<32x256xbf16, #tpu.memory_space<vmem>>)
    %c0_22 = arith.constant 0 : index
    %c0_23 = arith.constant 0 : index
    %25 = vector.load %arg3[%c0_22, %c0_23] : memref<832x256xbf16, #tpu.memory_space<vmem>>, vector<16x256xbf16>
    %c16 = arith.constant 16 : index
    %c0_24 = arith.constant 0 : index
    %26 = vector.load %arg3[%c16, %c0_24] : memref<832x256xbf16, #tpu.memory_space<vmem>>, vector<16x256xbf16>
    %27 = arith.extf %26 : vector<16x256xbf16> to vector<16x256xf32>
    %28 = arith.truncf %20 : vector<1x16xf32> to vector<1x16xbf16>
    %cst = arith.constant dense<0.000000e+00> : vector<1x256xf32>
    %29 = tpu.matmul %28, %25, %cst {dimension_numbers = #tpu.dot_dimension_numbers<[1], [0], [0], [1], [0, 0, 1, 1], [], []>} : vector<1x16xbf16>, vector<16x256xbf16>, vector<1x256xf32> -> vector<1x256xf32>
    %30 = vector.extract_strided_slice %27 {offsets = [0, 0], sizes = [1, 256], strides = [1, 1]} : vector<16x256xf32> to vector<1x256xf32>
    %31 = arith.addf %29, %30 : vector<1x256xf32>
    %32 = math.tanh %31 : vector<1x256xf32>
    %c1_i32_25 = arith.constant 1 : i32
    %c32_i32_26 = arith.constant 32 : i32
    %c0_i32_27 = arith.constant 0 : i32
    %33 = tpu.memref_slice %arg1[%c32_i32_26, %c0_i32_27] : memref<832x256xbf16, #tpu.memory_space<any>> -> memref<256x256xbf16, #tpu.memory_space<any>>
    %c32_i32_28 = arith.constant 32 : i32
    %c0_i32_29 = arith.constant 0 : i32
    %34 = tpu.memref_slice %arg3[%c32_i32_28, %c0_i32_29] : memref<832x256xbf16, #tpu.memory_space<vmem>> -> memref<256x256xbf16, #tpu.memory_space<vmem>>
    %35 = tpu.memref_slice %arg4[%c1_i32_25] : memref<5x!tpu.dma_semaphore, #tpu.memory_space<semaphore_mem>> -> memref<1x!tpu.dma_semaphore, #tpu.memory_space<semaphore_mem>>
    %36 = tpu.memref_squeeze %35 : memref<1x!tpu.dma_semaphore, #tpu.memory_space<semaphore_mem>> -> memref<!tpu.dma_semaphore, #tpu.memory_space<semaphore_mem>>
    tpu.wait_dma2 semaphore(%36 : memref<!tpu.dma_semaphore, #tpu.memory_space<semaphore_mem>>) src(%33 : memref<256x256xbf16, #tpu.memory_space<any>>) dst(%34 : memref<256x256xbf16, #tpu.memory_space<vmem>>)
    %c32 = arith.constant 32 : index
    %c0_30 = arith.constant 0 : index
    %37 = vector.load %arg3[%c32, %c0_30] : memref<832x256xbf16, #tpu.memory_space<vmem>>, vector<256x256xbf16>
    %38 = arith.truncf %32 : vector<1x256xf32> to vector<1x256xbf16>
    %cst_31 = arith.constant dense<0.000000e+00> : vector<1x256xf32>
    %39 = tpu.matmul %38, %37, %cst_31 {dimension_numbers = #tpu.dot_dimension_numbers<[1], [0], [0], [1], [0, 0, 1, 1], [], []>} : vector<1x256xbf16>, vector<256x256xbf16>, vector<1x256xf32> -> vector<1x256xf32>
    %40 = vector.extract_strided_slice %27 {offsets = [1, 0], sizes = [1, 256], strides = [1, 1]} : vector<16x256xf32> to vector<1x256xf32>
    %41 = arith.addf %39, %40 : vector<1x256xf32>
    %42 = math.tanh %41 : vector<1x256xf32>
    %c2_i32_32 = arith.constant 2 : i32
    %c288_i32_33 = arith.constant 288 : i32
    %c0_i32_34 = arith.constant 0 : i32
    %43 = tpu.memref_slice %arg1[%c288_i32_33, %c0_i32_34] : memref<832x256xbf16, #tpu.memory_space<any>> -> memref<256x256xbf16, #tpu.memory_space<any>>
    %c288_i32_35 = arith.constant 288 : i32
    %c0_i32_36 = arith.constant 0 : i32
    %44 = tpu.memref_slice %arg3[%c288_i32_35, %c0_i32_36] : memref<832x256xbf16, #tpu.memory_space<vmem>> -> memref<256x256xbf16, #tpu.memory_space<vmem>>
    %45 = tpu.memref_slice %arg4[%c2_i32_32] : memref<5x!tpu.dma_semaphore, #tpu.memory_space<semaphore_mem>> -> memref<1x!tpu.dma_semaphore, #tpu.memory_space<semaphore_mem>>
    %46 = tpu.memref_squeeze %45 : memref<1x!tpu.dma_semaphore, #tpu.memory_space<semaphore_mem>> -> memref<!tpu.dma_semaphore, #tpu.memory_space<semaphore_mem>>
    tpu.wait_dma2 semaphore(%46 : memref<!tpu.dma_semaphore, #tpu.memory_space<semaphore_mem>>) src(%43 : memref<256x256xbf16, #tpu.memory_space<any>>) dst(%44 : memref<256x256xbf16, #tpu.memory_space<vmem>>)
    %c288 = arith.constant 288 : index
    %c0_37 = arith.constant 0 : index
    %47 = vector.load %arg3[%c288, %c0_37] : memref<832x256xbf16, #tpu.memory_space<vmem>>, vector<256x256xbf16>
    %48 = arith.truncf %42 : vector<1x256xf32> to vector<1x256xbf16>
    %cst_38 = arith.constant dense<0.000000e+00> : vector<1x256xf32>
    %49 = tpu.matmul %48, %47, %cst_38 {dimension_numbers = #tpu.dot_dimension_numbers<[1], [0], [0], [1], [0, 0, 1, 1], [], []>} : vector<1x256xbf16>, vector<256x256xbf16>, vector<1x256xf32> -> vector<1x256xf32>
    %50 = vector.extract_strided_slice %27 {offsets = [2, 0], sizes = [1, 256], strides = [1, 1]} : vector<16x256xf32> to vector<1x256xf32>
    %51 = arith.addf %49, %50 : vector<1x256xf32>
    %52 = math.tanh %51 : vector<1x256xf32>
    %c3_i32_39 = arith.constant 3 : i32
    %c544_i32_40 = arith.constant 544 : i32
    %c0_i32_41 = arith.constant 0 : i32
    %53 = tpu.memref_slice %arg1[%c544_i32_40, %c0_i32_41] : memref<832x256xbf16, #tpu.memory_space<any>> -> memref<256x256xbf16, #tpu.memory_space<any>>
    %c544_i32_42 = arith.constant 544 : i32
    %c0_i32_43 = arith.constant 0 : i32
    %54 = tpu.memref_slice %arg3[%c544_i32_42, %c0_i32_43] : memref<832x256xbf16, #tpu.memory_space<vmem>> -> memref<256x256xbf16, #tpu.memory_space<vmem>>
    %55 = tpu.memref_slice %arg4[%c3_i32_39] : memref<5x!tpu.dma_semaphore, #tpu.memory_space<semaphore_mem>> -> memref<1x!tpu.dma_semaphore, #tpu.memory_space<semaphore_mem>>
    %56 = tpu.memref_squeeze %55 : memref<1x!tpu.dma_semaphore, #tpu.memory_space<semaphore_mem>> -> memref<!tpu.dma_semaphore, #tpu.memory_space<semaphore_mem>>
    tpu.wait_dma2 semaphore(%56 : memref<!tpu.dma_semaphore, #tpu.memory_space<semaphore_mem>>) src(%53 : memref<256x256xbf16, #tpu.memory_space<any>>) dst(%54 : memref<256x256xbf16, #tpu.memory_space<vmem>>)
    %c544 = arith.constant 544 : index
    %c0_44 = arith.constant 0 : index
    %57 = vector.load %arg3[%c544, %c0_44] : memref<832x256xbf16, #tpu.memory_space<vmem>>, vector<256x256xbf16>
    %58 = arith.truncf %52 : vector<1x256xf32> to vector<1x256xbf16>
    %cst_45 = arith.constant dense<0.000000e+00> : vector<1x256xf32>
    %59 = tpu.matmul %58, %57, %cst_45 {dimension_numbers = #tpu.dot_dimension_numbers<[1], [0], [0], [1], [0, 0, 1, 1], [], []>} : vector<1x256xbf16>, vector<256x256xbf16>, vector<1x256xf32> -> vector<1x256xf32>
    %60 = vector.extract_strided_slice %27 {offsets = [3, 0], sizes = [1, 256], strides = [1, 1]} : vector<16x256xf32> to vector<1x256xf32>
    %61 = arith.addf %59, %60 : vector<1x256xf32>
    %62 = math.tanh %61 : vector<1x256xf32>
    %c4_i32_46 = arith.constant 4 : i32
    %c800_i32_47 = arith.constant 800 : i32
    %c0_i32_48 = arith.constant 0 : i32
    %63 = tpu.memref_slice %arg1[%c800_i32_47, %c0_i32_48] : memref<832x256xbf16, #tpu.memory_space<any>> -> memref<32x256xbf16, #tpu.memory_space<any>>
    %c800_i32_49 = arith.constant 800 : i32
    %c0_i32_50 = arith.constant 0 : i32
    %64 = tpu.memref_slice %arg3[%c800_i32_49, %c0_i32_50] : memref<832x256xbf16, #tpu.memory_space<vmem>> -> memref<32x256xbf16, #tpu.memory_space<vmem>>
    %65 = tpu.memref_slice %arg4[%c4_i32_46] : memref<5x!tpu.dma_semaphore, #tpu.memory_space<semaphore_mem>> -> memref<1x!tpu.dma_semaphore, #tpu.memory_space<semaphore_mem>>
    %66 = tpu.memref_squeeze %65 : memref<1x!tpu.dma_semaphore, #tpu.memory_space<semaphore_mem>> -> memref<!tpu.dma_semaphore, #tpu.memory_space<semaphore_mem>>
    tpu.wait_dma2 semaphore(%66 : memref<!tpu.dma_semaphore, #tpu.memory_space<semaphore_mem>>) src(%63 : memref<32x256xbf16, #tpu.memory_space<any>>) dst(%64 : memref<32x256xbf16, #tpu.memory_space<vmem>>)
    %c800 = arith.constant 800 : index
    %c0_51 = arith.constant 0 : index
    %67 = vector.load %arg3[%c800, %c0_51] : memref<832x256xbf16, #tpu.memory_space<vmem>>, vector<16x256xbf16>
    %68 = arith.extf %67 : vector<16x256xbf16> to vector<16x256xf32>
    %c816 = arith.constant 816 : index
    %c0_52 = arith.constant 0 : index
    %69 = vector.load %arg3[%c816, %c0_52] : memref<832x256xbf16, #tpu.memory_space<vmem>>, vector<16x256xbf16>
    %70 = arith.extf %69 : vector<16x256xbf16> to vector<16x256xf32>
    %71 = vector.extract_strided_slice %70 {offsets = [0, 0], sizes = [16, 1], strides = [1, 1]} : vector<16x256xf32> to vector<16x1xf32>
    %72 = vector.broadcast %62 : vector<1x256xf32> to vector<16x256xf32>
    %73 = arith.mulf %68, %72 : vector<16x256xf32>
    %cst_53 = arith.constant dense<0.000000e+00> : vector<16xf32>
    %74 = vector.multi_reduction <add>, %73, %cst_53 [1] : vector<16x256xf32> to vector<16xf32>
    %75 = vector.shape_cast %74 : vector<16xf32> to vector<16x1xf32>
    %76 = arith.addf %75, %71 : vector<16x1xf32>
    %77 = arith.mulf %62, %62 : vector<1x256xf32>
    %cst_54 = arith.constant 1.000000e+00 : f32
    %78 = vector.broadcast %cst_54 : f32 to vector<1x256xf32>
    %79 = arith.subf %78, %77 : vector<1x256xf32>
    %80 = vector.broadcast %79 : vector<1x256xf32> to vector<16x256xf32>
    %81 = arith.mulf %68, %80 : vector<16x256xf32>
    %82 = arith.truncf %81 : vector<16x256xf32> to vector<16x256xbf16>
    %cst_55 = arith.constant dense<0.000000e+00> : vector<16x256xf32>
    %83 = tpu.matmul %82, %57, %cst_55 {dimension_numbers = #tpu.dot_dimension_numbers<[1], [1], [0], [0], [0, 0, 1, 0], [], []>} : vector<16x256xbf16>, vector<256x256xbf16>, vector<16x256xf32> -> vector<16x256xf32>
    %84 = arith.mulf %52, %52 : vector<1x256xf32>
    %cst_56 = arith.constant 1.000000e+00 : f32
    %85 = vector.broadcast %cst_56 : f32 to vector<1x256xf32>
    %86 = arith.subf %85, %84 : vector<1x256xf32>
    %87 = vector.broadcast %86 : vector<1x256xf32> to vector<16x256xf32>
    %88 = arith.mulf %83, %87 : vector<16x256xf32>
    %89 = arith.truncf %88 : vector<16x256xf32> to vector<16x256xbf16>
    %cst_57 = arith.constant dense<0.000000e+00> : vector<16x256xf32>
    %90 = tpu.matmul %89, %47, %cst_57 {dimension_numbers = #tpu.dot_dimension_numbers<[1], [1], [0], [0], [0, 0, 1, 0], [], []>} : vector<16x256xbf16>, vector<256x256xbf16>, vector<16x256xf32> -> vector<16x256xf32>
    %91 = arith.mulf %42, %42 : vector<1x256xf32>
    %cst_58 = arith.constant 1.000000e+00 : f32
    %92 = vector.broadcast %cst_58 : f32 to vector<1x256xf32>
    %93 = arith.subf %92, %91 : vector<1x256xf32>
    %94 = vector.broadcast %93 : vector<1x256xf32> to vector<16x256xf32>
    %95 = arith.mulf %90, %94 : vector<16x256xf32>
    %96 = arith.truncf %95 : vector<16x256xf32> to vector<16x256xbf16>
    %cst_59 = arith.constant dense<0.000000e+00> : vector<16x256xf32>
    %97 = tpu.matmul %96, %37, %cst_59 {dimension_numbers = #tpu.dot_dimension_numbers<[1], [1], [0], [0], [0, 0, 1, 0], [], []>} : vector<16x256xbf16>, vector<256x256xbf16>, vector<16x256xf32> -> vector<16x256xf32>
    %98 = arith.mulf %32, %32 : vector<1x256xf32>
    %cst_60 = arith.constant 1.000000e+00 : f32
    %99 = vector.broadcast %cst_60 : f32 to vector<1x256xf32>
    %100 = arith.subf %99, %98 : vector<1x256xf32>
    %101 = vector.broadcast %100 : vector<1x256xf32> to vector<16x256xf32>
    %102 = arith.mulf %97, %101 : vector<16x256xf32>
    %103 = arith.truncf %102 : vector<16x256xf32> to vector<16x256xbf16>
    %cst_61 = arith.constant dense<0.000000e+00> : vector<16x16xf32>
    %104 = tpu.matmul %103, %25, %cst_61 {dimension_numbers = #tpu.dot_dimension_numbers<[1], [1], [0], [0], [0, 0, 1, 0], [], []>} : vector<16x256xbf16>, vector<16x256xbf16>, vector<16x16xf32> -> vector<16x16xf32>
    %105 = vector.extract_strided_slice %20 {offsets = [0, 0], sizes = [1, 2], strides = [1, 1]} : vector<1x16xf32> to vector<1x2xf32>
    %106 = vector.extract_strided_slice %20 {offsets = [0, 2], sizes = [1, 2], strides = [1, 1]} : vector<1x16xf32> to vector<1x2xf32>
    %107 = vector.extract_strided_slice %104 {offsets = [0, 0], sizes = [16, 2], strides = [1, 1]} : vector<16x16xf32> to vector<16x2xf32>
    %cst_62 = arith.constant 0.000000e+00 : f32
    %108 = vector.broadcast %cst_62 : f32 to vector<1x2xf32>
    %109 = arith.subf %108, %106 : vector<1x2xf32>
    %110 = vector.broadcast %109 : vector<1x2xf32> to vector<16x2xf32>
    %111 = arith.mulf %107, %110 : vector<16x2xf32>
    %112 = vector.extract_strided_slice %104 {offsets = [0, 2], sizes = [16, 2], strides = [1, 1]} : vector<16x16xf32> to vector<16x2xf32>
    %113 = vector.broadcast %105 : vector<1x2xf32> to vector<16x2xf32>
    %114 = arith.mulf %112, %113 : vector<16x2xf32>
    %115 = arith.addf %111, %114 : vector<16x2xf32>
    %cst_63 = arith.constant 9.648500e+01 : f32
    %116 = vector.broadcast %cst_63 : f32 to vector<16x2xf32>
    %117 = arith.mulf %115, %116 : vector<16x2xf32>
    %cst_64 = arith.constant dense<0.000000e+00> : vector<2xf32>
    %118 = vector.multi_reduction <add>, %117, %cst_64 [0] : vector<16x2xf32> to vector<2xf32>
    %119 = vector.shape_cast %118 : vector<2xf32> to vector<1x2xf32>
    %120 = arith.mulf %117, %117 : vector<16x2xf32>
    %cst_65 = arith.constant dense<0.000000e+00> : vector<2xf32>
    %121 = vector.multi_reduction <add>, %120, %cst_65 [0] : vector<16x2xf32> to vector<2xf32>
    %122 = vector.shape_cast %121 : vector<2xf32> to vector<1x2xf32>
    %cst_66 = arith.constant 4.000000e+00 : f32
    %123 = vector.broadcast %cst_66 : f32 to vector<1x2xf32>
    %124 = arith.divf %119, %123 : vector<1x2xf32>
    %cst_67 = arith.constant 4.000000e+00 : f32
    %125 = vector.broadcast %cst_67 : f32 to vector<1x2xf32>
    %126 = arith.mulf %125, %124 : vector<1x2xf32>
    %127 = arith.mulf %126, %124 : vector<1x2xf32>
    %128 = arith.subf %122, %127 : vector<1x2xf32>
    %cst_68 = arith.constant 3.000000e+00 : f32
    %129 = vector.broadcast %cst_68 : f32 to vector<1x2xf32>
    %130 = arith.divf %128, %129 : vector<1x2xf32>
    %cst_69 = arith.constant dense<0.000000e+00> : vector<1xf32>
    %131 = vector.multi_reduction <add>, %130, %cst_69 [1] : vector<1x2xf32> to vector<1xf32>
    %132 = vector.shape_cast %131 : vector<1xf32> to vector<1x1xf32>
    %cst_70 = arith.constant 2.000000e+00 : f32
    %133 = vector.broadcast %cst_70 : f32 to vector<1x1xf32>
    %134 = arith.divf %132, %133 : vector<1x1xf32>
    %135 = math.sqrt %134 : vector<1x1xf32>
    %cst_71 = arith.constant 3.000000e+00 : f32
    %136 = vector.broadcast %cst_71 : f32 to vector<1x1xf32>
    %137 = arith.subf %136, %135 : vector<1x1xf32>
    %cst_72 = arith.constant 1.000000e+00 : f32
    %138 = vector.broadcast %cst_72 : f32 to vector<1x1xf32>
    %139 = arith.divf %137, %138 : vector<1x1xf32>
    %140 = math.floor %139 : vector<1x1xf32>
    %cst_73 = arith.constant 1.000000e+00 : f32
    %141 = vector.broadcast %cst_73 : f32 to vector<1x1xf32>
    %142 = arith.subf %141, %139 : vector<1x1xf32>
    %cst_74 = arith.constant 3.14159274 : f32
    %143 = vector.broadcast %cst_74 : f32 to vector<1x1xf32>
    %144 = arith.mulf %143, %142 : vector<1x1xf32>
    %145 = math.cos %144 : vector<1x1xf32>
    %cst_75 = arith.constant 1.000000e+00 : f32
    %146 = vector.broadcast %cst_75 : f32 to vector<1x1xf32>
    %147 = arith.addf %146, %145 : vector<1x1xf32>
    %cst_76 = arith.constant 5.000000e-01 : f32
    %148 = vector.broadcast %cst_76 : f32 to vector<1x1xf32>
    %149 = arith.mulf %148, %147 : vector<1x1xf32>
    %cst_77 = arith.constant 0.000000e+00 : f32
    %150 = vector.broadcast %cst_77 : f32 to vector<1x1xf32>
    %151 = arith.cmpf ogt, %140, %150 : vector<1x1xf32>
    %cst_78 = arith.constant 0.000000e+00 : f32
    %152 = vector.broadcast %cst_78 : f32 to vector<1x1xf32>
    %153 = arith.cmpf olt, %140, %152 : vector<1x1xf32>
    %cst_79 = arith.constant 0.000000e+00 : f32
    %154 = vector.broadcast %cst_79 : f32 to vector<1x1xf32>
    %155 = arith.select %153, %154, %149 : vector<1x1xi1>, vector<1x1xf32>
    %cst_80 = arith.constant 1.000000e+00 : f32
    %156 = vector.broadcast %cst_80 : f32 to vector<1x1xf32>
    %157 = arith.select %151, %156, %155 : vector<1x1xi1>, vector<1x1xf32>
    %cst_81 = arith.constant dense<0.000000e+00> : vector<1xf32>
    %158 = vector.multi_reduction <add>, %76, %cst_81 [0] : vector<16x1xf32> to vector<1xf32>
    %159 = vector.shape_cast %158 : vector<1xf32> to vector<1x1xf32>
    %cst_82 = arith.constant 24.1212502 : f32
    %160 = vector.broadcast %cst_82 : f32 to vector<1x1xf32>
    %161 = arith.mulf %159, %160 : vector<1x1xf32>
    %cst_83 = arith.constant 0.000000e+00 : f32
    %162 = vector.broadcast %cst_83 : f32 to vector<1x125xf32>
    %163 = tpu.concatenate %161, %124, %162 in 1 : vector<1x1xf32>, vector<1x2xf32>, vector<1x125xf32> -> vector<1x128xf32>
    %164 = vector.broadcast %157 : vector<1x1xf32> to vector<1x128xf32>
    %165 = arith.mulf %163, %164 : vector<1x128xf32>
    %c0_84 = arith.constant 0 : index
    %c0_85 = arith.constant 0 : index
    %166 = vector.load %arg2[%c0_84, %c0_85] : memref<1x128xf32, #tpu.memory_space<vmem>>, vector<1x128xf32>
    tpu.vector_store %arg2[%c0_84, %c0_85], %165 {strides = array<i32>} : memref<1x128xf32, #tpu.memory_space<vmem>>, vector<1x128xf32>,
    return
  }
}

</mosaic_0001>

<llo_original>
// kernel: _lambda_.1
$region0: #{_lambda_.1}
  #allocation0 [shape = 'u32[]', space=smem, size = 0x4, offset = 0x4, fixed_abs, tag = 'smem constant byte address 0x4 - core index']
  #allocation1 [shape = 'u32[144,128]{1,0:T(1,128)}', space=vmem, size = 0x12000, scoped, tag = 'internal scratch']
  #allocation2 [shape = 'bf16[832,256]{1,0:T(8,128)(2,1)}', space=vmem, size = 0x68000, scoped, tag = 'scratch operand']
  #allocation3 [shape = 's32[5]{0}', space=sflag, size = 0x14, scoped, tag = 'scratch operand']
  #allocation4 [shape = 's32[]', space=sflag, size = 0x4, offset = 0, fixed_abs, tag = 'sflag constant byte address 0x0 - dummy sync flag']
  #allocation5 [shape = 's32[]', space=sflag, size = 0x4, offset = 0, fixed_abs, tag = 'sflag constant byte address 0x0 - dummy sync flag']
  #allocation6 [shape = 'u32[]', space=smem, size = 0x4, offset = 0x44, fixed_abs, tag = 'smem constant byte address 0x44 - assertion arg 0']
  #allocation7 [shape = 'u32[]', space=smem, size = 0x4, offset = 0x48, fixed_abs, tag = 'smem constant byte address 0x48 - assertion arg 1']
  #allocation8 [shape = 's32[]', space=sflag, size = 0x4, offset = 0, fixed_abs, tag = 'sflag constant byte address 0x0 - dummy sync flag']
  #allocation9 [shape = 's32[]', space=sflag, size = 0x4, offset = 0, fixed_abs, tag = 'sflag constant byte address 0x0 - dummy sync flag']
  #allocation10 [shape = 's32[]', space=sflag, size = 0x4, offset = 0, fixed_abs, tag = 'sflag constant byte address 0x0 - dummy sync flag']
  #allocation11 [shape = 's32[]', space=sflag, size = 0x4, offset = 0, fixed_abs, tag = 'sflag constant byte address 0x0 - dummy sync flag']
  #allocation12 [shape = 's32[]', space=sflag, size = 0x4, offset = 0, fixed_abs, tag = 'sflag constant byte address 0x0 - dummy sync flag']
  #allocation13 [shape = 's32[]', space=sflag, size = 0x4, offset = 0, fixed_abs, tag = 'sflag constant byte address 0x0 - dummy sync flag']
  #allocation14 [shape = 's32[]', space=sflag, size = 0x4, offset = 0, fixed_abs, tag = 'sflag constant byte address 0x0 - dummy sync flag']
  #allocation15 [shape = 's32[]', space=sflag, size = 0x4, offset = 0, fixed_abs, tag = 'sflag constant byte address 0x0 - dummy sync flag']
  %s0 = inlined_call_operand.vmem [shape: f32[1,16], index: 0, kind: input, shape index: {}]
  %s1 = inlined_call_operand.hbm [shape: bf16[832,256], index: 1, kind: input, shape index: {}]
  %s2 = inlined_call_operand.vmem [shape: f32[1,128], index: 2, kind: output, shape index: {}]
  %s3 = sld [smem:[#allocation0]]
  $region34: #{_lambda_.1} parent=0
    _
  %s5 = ssub.s32 1, %s3
  %s6 = scalar_select 0, %s5, %s3
  // Predicated region
  $region2: #{_lambda_.1} parent=0 // pred_check
    _
  $region3: #{_lambda_.1} parent=0 // pred_check_branch
    %8 = sbr.rel (0) target = $region5
  $region4: #{_lambda_.1} parent=0 // pred_region
    _
  $region5: #{_lambda_.1} parent=0 // pred_fallthru
    _
  // Predicated region
  $region6: #{_lambda_.1} parent=0 // pred_check
    _
  $region7: #{_lambda_.1} parent=0 // pred_check_branch
    %11 = sbr.rel target = $region9
  $region8: #{_lambda_.1} parent=0 // pred_region
    %12 = sst [smem:[#allocation6]] [#allocation5]
    %13 = sst [smem:[#allocation7]] [#allocation4]
  $region9: #{_lambda_.1} parent=0 // pred_fallthru
    _
  %15 = shalt.err (0)
  %s17 = sshll.u32 [#allocation2], 4
  %s18 = int_to_ptr.vmem [resolvable:$true] %s17
  %20 = dma.hbm_to_vmem [thread:$0]  %s1, 512, %s18, [#allocation3]
  %s21 = scalar_lea.hbm %s1, 512
  %s22 = scalar_lea.vmem [#allocation2], 32
  %s23 = scalar_lea.sflag [#allocation3], 1
  // Predicated region
  $region10: #{_lambda_.1} parent=0 // pred_check
    _
  $region11: #{_lambda_.1} parent=0 // pred_check_branch
    %25 = sbr.rel target = $region13
  $region12: #{_lambda_.1} parent=0 // pred_region
    %26 = sst [smem:[#allocation6]] [#allocation9]
    %27 = sst [smem:[#allocation7]] [#allocation8]
  $region13: #{_lambda_.1} parent=0 // pred_fallthru
    _
  %29 = shalt.err (0)
  %s31 = sshll.u32 %s22, 4
  %s32 = int_to_ptr.vmem [resolvable:$true] %s31
  %34 = dma.hbm_to_vmem [thread:$0]  %s21, 4096, %s32, %s23
  %s35 = scalar_lea.hbm %s1, 4608
  %s36 = scalar_lea.vmem [#allocation2], 288
  %s37 = scalar_lea.sflag [#allocation3], 2
  // Predicated region
  $region14: #{_lambda_.1} parent=0 // pred_check
    _
  $region15: #{_lambda_.1} parent=0 // pred_check_branch
    %39 = sbr.rel target = $region17
  $region16: #{_lambda_.1} parent=0 // pred_region
    %40 = sst [smem:[#allocation6]] [#allocation11]
    %41 = sst [smem:[#allocation7]] [#allocation10]
  $region17: #{_lambda_.1} parent=0 // pred_fallthru
    _
  %43 = shalt.err (0)
  %s45 = sshll.u32 %s36, 4
  %s46 = int_to_ptr.vmem [resolvable:$true] %s45
  %48 = dma.hbm_to_vmem [thread:$0]  %s35, 4096, %s46, %s37
  %s49 = scalar_lea.hbm %s1, 8704
  %s50 = scalar_lea.vmem [#allocation2], 544
  %s51 = scalar_lea.sflag [#allocation3], 3
  // Predicated region
  $region18: #{_lambda_.1} parent=0 // pred_check
    _
  $region19: #{_lambda_.1} parent=0 // pred_check_branch
    %53 = sbr.rel target = $region21
  $region20: #{_lambda_.1} parent=0 // pred_region
    %54 = sst [smem:[#allocation6]] [#allocation13]
    %55 = sst [smem:[#allocation7]] [#allocation12]
  $region21: #{_lambda_.1} parent=0 // pred_fallthru
    _
  %57 = shalt.err (0)
  %s59 = sshll.u32 %s50, 4
  %s60 = int_to_ptr.vmem [resolvable:$true] %s59
  %62 = dma.hbm_to_vmem [thread:$0]  %s49, 4096, %s60, %s51
  %s63 = scalar_lea.hbm %s1, 12800
  %s64 = scalar_lea.vmem [#allocation2], 800
  %s65 = scalar_lea.sflag [#allocation3], 4
  // Predicated region
  $region22: #{_lambda_.1} parent=0 // pred_check
    _
  $region23: #{_lambda_.1} parent=0 // pred_check_branch
    %67 = sbr.rel target = $region25
  $region24: #{_lambda_.1} parent=0 // pred_region
    %68 = sst [smem:[#allocation6]] [#allocation15]
    %69 = sst [smem:[#allocation7]] [#allocation14]
  $region25: #{_lambda_.1} parent=0 // pred_fallthru
    _
  %71 = shalt.err (0)
  %s73 = sshll.u32 %s64, 4
  %s74 = int_to_ptr.vmem [resolvable:$true] %s73
  %76 = dma.hbm_to_vmem [thread:$0]  %s63, 512, %s74, %s65
  %v77 = vld [vmem:[%s0] sm:$0x1]
  %s78 = smul.u32 4, 4
  %s79 = smul.u32 %s78, 2
  %s80 = sshll.u32 %s79, 4
  %81 = dma.done [#allocation3], %s80
  %v82 = vld [vmem:[#allocation2] sm:$0xff]
  %v83 = vld [vmem:[#allocation2 + $0x8] sm:$0xff]
  %v84 = vld [vmem:[#allocation2 + $0x10] sm:$0xff]
  %v85 = vunpack.c.l.bf16 %v84
  %v86 = vunpack.c.h.bf16 %v84
  %v87 = vpack.c.bf16 %v77, %v77
  %v90 = vunpack.c.l.b16 %v82
  %v91 = vunpack.c.h.b16 %v82
  %v92 = vunpack.c.l.b16 %v83
  %v93 = vunpack.c.h.b16 %v83
  %v94 = vpack.c.b16 %v92, %v90
  %v95 = vpack.c.b16 %v93, %v91
  %vm98 = vcmask 130048
  %v100 = vsel %vm98, %v87, 0
  %102 = vmatprep.subr.bf16.mxu0 0
  %103 = vmatpush1.bf16.msra.mxu0 0
  %104 = vmatprep.subr.bf16.mxu0 0
  %105 = vmatpush1.bf16.msra.mxu0 0
  %106 = vmatprep.subr.bf16.mxu0 0
  %107 = vmatpush1.bf16.msra.mxu0 0
  %108 = vmatprep.subr.bf16.mxu0 0
  %109 = vmatpush1.bf16.msra.mxu0 0
  %110 = vmatprep.subr.bf16.mxu0 0
  %111 = vmatpush1.bf16.msra.mxu0 0
  %112 = vmatprep.subr.bf16.mxu0 0
  %113 = vmatpush1.bf16.msra.mxu0 0
  %114 = vmatprep.subr.bf16.mxu0 0
  %115 = vmatpush1.bf16.msra.mxu0 0
  %116 = vmatprep.subr.bf16.mxu0 %v95
  %117 = vmatpush1.bf16.msra.mxu0 %v94
  %118 = vmatprep.subr.bf16.mxu0 0
  %119 = vmatpush2.bf16.msra.mxu0 0
  %120 = vmatprep.subr.bf16.mxu0 0
  %121 = vmatpush2.bf16.msra.mxu0 0
  %122 = vmatprep.subr.bf16.mxu0 0
  %123 = vmatpush2.bf16.msra.mxu0 0
  %124 = vmatprep.subr.bf16.mxu0 0
  %125 = vmatpush2.bf16.msra.mxu0 0
  %126 = vmatprep.subr.bf16.mxu0 0
  %127 = vmatpush2.bf16.msra.mxu0 0
  %128 = vmatprep.subr.bf16.mxu0 0
  %129 = vmatpush2.bf16.msra.mxu0 0
  %130 = vmatprep.subr.bf16.mxu0 0
  %131 = vmatpush2.bf16.msra.mxu0 0
  %132 = vmatprep.subr.bf16.mxu0 0
  %133 = vmatpush2.bf16.msra.mxu0 0
  %134 = vmatprep.mubr.bf16.mxu0 0
  %135 = vmatmul.mubr.bf16.gmra.mxu0 %v100
  %v136 = vpop.f32.mrf.mxu0
  %v137 = vadd.f32 %v85, %v136
  %v138 = vpop.f32.mrf.mxu0
  %v139 = vadd.f32 %v86, %v138
  %v140 = vpop.f32.mrf.mxu0
  %v141 = vpop.f32.mrf.mxu0
  %142 = vdwg.mxu0
  %v143 = vtanh.pop %v137
  %v144 = vtanh.pop %v139
  %s145 = smul.u32 4, 32
  %s146 = smul.u32 %s145, 2
  %s147 = sshll.u32 %s146, 4
  %148 = dma.done %s23, %s147
  %v149 = vld [vmem:[#allocation2 + $0x20] sm:$0xff]
  %v150 = vld [vmem:[#allocation2 + $0x28] sm:$0xff]
  %v151 = vld [vmem:[#allocation2 + $0x30] sm:$0xff]
  %v152 = vld [vmem:[#allocation2 + $0x38] sm:$0xff]
  %v153 = vld [vmem:[#allocation2 + $0x40] sm:$0xff]
  %v154 = vld [vmem:[#allocation2 + $0x48] sm:$0xff]
  %v155 = vld [vmem:[#allocation2 + $0x50] sm:$0xff]
  %v156 = vld [vmem:[#allocation2 + $0x58] sm:$0xff]
  %v157 = vld [vmem:[#allocation2 + $0x60] sm:$0xff]
  %v158 = vld [vmem:[#allocation2 + $0x68] sm:$0xff]
  %v159 = vld [vmem:[#allocation2 + $0x70] sm:$0xff]
  %v160 = vld [vmem:[#allocation2 + $0x78] sm:$0xff]
  %v161 = vld [vmem:[#allocation2 + $0x80] sm:$0xff]
  %v162 = vld [vmem:[#allocation2 + $0x88] sm:$0xff]
  %v163 = vld [vmem:[#allocation2 + $0x90] sm:$0xff]
  %v164 = vld [vmem:[#allocation2 + $0x98] sm:$0xff]
  %v165 = vld [vmem:[#allocation2 + $0xa0] sm:$0xff]
  %v166 = vld [vmem:[#allocation2 + $0xa8] sm:$0xff]
  %v167 = vld [vmem:[#allocation2 + $0xb0] sm:$0xff]
  %v168 = vld [vmem:[#allocation2 + $0xb8] sm:$0xff]
  %v169 = vld [vmem:[#allocation2 + $0xc0] sm:$0xff]
  %v170 = vld [vmem:[#allocation2 + $0xc8] sm:$0xff]
  %v171 = vld [vmem:[#allocation2 + $0xd0] sm:$0xff]
  %v172 = vld [vmem:[#allocation2 + $0xd8] sm:$0xff]
  %v173 = vld [vmem:[#allocation2 + $0xe0] sm:$0xff]
  %v174 = vld [vmem:[#allocation2 + $0xe8] sm:$0xff]
  %v175 = vld [vmem:[#allocation2 + $0xf0] sm:$0xff]
  %v176 = vld [vmem:[#allocation2 + $0xf8] sm:$0xff]
  %v177 = vld [vmem:[#allocation2 + $0x100] sm:$0xff]
  %v178 = vld [vmem:[#allocation2 + $0x108] sm:$0xff]
  %v179 = vld [vmem:[#allocation2 + $0x110] sm:$0xff]
  %v180 = vld [vmem:[#allocation2 + $0x118] sm:$0xff]
  %v181 = vpack.c.bf16 %v143, %v143
  %v182 = vpack.c.bf16 %v144, %v144
  %v215 = vunpack.c.l.b16 %v149
  %v216 = vunpack.c.h.b16 %v149
  %v217 = vunpack.c.l.b16 %v150
  %v218 = vunpack.c.h.b16 %v150
  %v219 = vunpack.c.l.b16 %v151
  %v220 = vunpack.c.h.b16 %v151
  %v221 = vunpack.c.l.b16 %v152
  %v222 = vunpack.c.h.b16 %v152
  %v223 = vunpack.c.l.b16 %v153
  %v224 = vunpack.c.h.b16 %v153
  %v225 = vunpack.c.l.b16 %v154
  %v226 = vunpack.c.h.b16 %v154
  %v227 = vunpack.c.l.b16 %v155
  %v228 = vunpack.c.h.b16 %v155
  %v229 = vunpack.c.l.b16 %v156
  %v230 = vunpack.c.h.b16 %v156
  %v231 = vunpack.c.l.b16 %v157
  %v232 = vunpack.c.h.b16 %v157
  %v233 = vunpack.c.l.b16 %v158
  %v234 = vunpack.c.h.b16 %v158
  %v235 = vunpack.c.l.b16 %v159
  %v236 = vunpack.c.h.b16 %v159
  %v237 = vunpack.c.l.b16 %v160
  %v238 = vunpack.c.h.b16 %v160
  %v239 = vunpack.c.l.b16 %v161
  %v240 = vunpack.c.h.b16 %v161
  %v241 = vunpack.c.l.b16 %v162
  %v242 = vunpack.c.h.b16 %v162
  %v243 = vunpack.c.l.b16 %v163
  %v244 = vunpack.c.h.b16 %v163
  %v245 = vunpack.c.l.b16 %v164
  %v246 = vunpack.c.h.b16 %v164
  %v247 = vunpack.c.l.b16 %v165
  %v248 = vunpack.c.h.b16 %v165
  %v249 = vunpack.c.l.b16 %v166
  %v250 = vunpack.c.h.b16 %v166
  %v251 = vunpack.c.l.b16 %v167
  %v252 = vunpack.c.h.b16 %v167
  %v253 = vunpack.c.l.b16 %v168
  %v254 = vunpack.c.h.b16 %v168
  %v255 = vunpack.c.l.b16 %v169
  %v256 = vunpack.c.h.b16 %v169
  %v257 = vunpack.c.l.b16 %v170
  %v258 = vunpack.c.h.b16 %v170
  %v259 = vunpack.c.l.b16 %v171
  %v260 = vunpack.c.h.b16 %v171
  %v261 = vunpack.c.l.b16 %v172
  %v262 = vunpack.c.h.b16 %v172
  %v263 = vunpack.c.l.b16 %v173
  %v264 = vunpack.c.h.b16 %v173
  %v265 = vunpack.c.l.b16 %v174
  %v266 = vunpack.c.h.b16 %v174
  %v267 = vunpack.c.l.b16 %v175
  %v268 = vunpack.c.h.b16 %v175
  %v269 = vunpack.c.l.b16 %v176
  %v270 = vunpack.c.h.b16 %v176
  %v271 = vunpack.c.l.b16 %v177
  %v272 = vunpack.c.h.b16 %v177
  %v273 = vunpack.c.l.b16 %v178
  %v274 = vunpack.c.h.b16 %v178
  %v275 = vunpack.c.l.b16 %v179
  %v276 = vunpack.c.h.b16 %v179
  %v277 = vunpack.c.l.b16 %v180
  %v278 = vunpack.c.h.b16 %v180
  %v279 = vpack.c.b16 %v217, %v215
  %v280 = vpack.c.b16 %v218, %v216
  %v281 = vpack.c.b16 %v221, %v219
  %v282 = vpack.c.b16 %v222, %v220
  %v283 = vpack.c.b16 %v225, %v223
  %v284 = vpack.c.b16 %v226, %v224
  %v285 = vpack.c.b16 %v229, %v227
  %v286 = vpack.c.b16 %v230, %v228
  %v287 = vpack.c.b16 %v233, %v231
  %v288 = vpack.c.b16 %v234, %v232
  %v289 = vpack.c.b16 %v237, %v235
  %v290 = vpack.c.b16 %v238, %v236
  %v291 = vpack.c.b16 %v241, %v239
  %v292 = vpack.c.b16 %v242, %v240
  %v293 = vpack.c.b16 %v245, %v243
  %v294 = vpack.c.b16 %v246, %v244
  %v295 = vpack.c.b16 %v249, %v247
  %v296 = vpack.c.b16 %v250, %v248
  %v297 = vpack.c.b16 %v253, %v251
  %v298 = vpack.c.b16 %v254, %v252
  %v299 = vpack.c.b16 %v257, %v255
  %v300 = vpack.c.b16 %v258, %v256
  %v301 = vpack.c.b16 %v261, %v259
  %v302 = vpack.c.b16 %v262, %v260
  %v303 = vpack.c.b16 %v265, %v263
  %v304 = vpack.c.b16 %v266, %v264
  %v305 = vpack.c.b16 %v269, %v267
  %v306 = vpack.c.b16 %v270, %v268
  %v307 = vpack.c.b16 %v273, %v271
  %v308 = vpack.c.b16 %v274, %v272
  %v309 = vpack.c.b16 %v277, %v275
  %v310 = vpack.c.b16 %v278, %v276
  %v345 = vrot.slane %v85, 1
  %v346 = vrot.slane %v86, 1
  %349 = vmatprep.subr.bf16.mxu0 %v294
  %350 = vmatpush1.bf16.msra.mxu0 %v293
  %351 = vmatprep.subr.bf16.mxu0 %v292
  %352 = vmatpush1.bf16.msra.mxu0 %v291
  %353 = vmatprep.subr.bf16.mxu0 %v290
  %354 = vmatpush1.bf16.msra.mxu0 %v289
  %355 = vmatprep.subr.bf16.mxu0 %v288
  %356 = vmatpush1.bf16.msra.mxu0 %v287
  %357 = vmatprep.subr.bf16.mxu0 %v286
  %358 = vmatpush1.bf16.msra.mxu0 %v285
  %359 = vmatprep.subr.bf16.mxu0 %v284
  %360 = vmatpush1.bf16.msra.mxu0 %v283
  %361 = vmatprep.subr.bf16.mxu0 %v282
  %362 = vmatpush1.bf16.msra.mxu0 %v281
  %363 = vmatprep.subr.bf16.mxu0 %v280
  %364 = vmatpush1.bf16.msra.mxu0 %v279
  %365 = vmatprep.subr.bf16.mxu0 %v310
  %366 = vmatpush2.bf16.msra.mxu0 %v309
  %367 = vmatprep.subr.bf16.mxu0 %v308
  %368 = vmatpush2.bf16.msra.mxu0 %v307
  %369 = vmatprep.subr.bf16.mxu0 %v306
  %370 = vmatpush2.bf16.msra.mxu0 %v305
  %371 = vmatprep.subr.bf16.mxu0 %v304
  %372 = vmatpush2.bf16.msra.mxu0 %v303
  %373 = vmatprep.subr.bf16.mxu0 %v302
  %374 = vmatpush2.bf16.msra.mxu0 %v301
  %375 = vmatprep.subr.bf16.mxu0 %v300
  %376 = vmatpush2.bf16.msra.mxu0 %v299
  %377 = vmatprep.subr.bf16.mxu0 %v298
  %378 = vmatpush2.bf16.msra.mxu0 %v297
  %379 = vmatprep.subr.bf16.mxu0 %v296
  %380 = vmatpush2.bf16.msra.mxu0 %v295
  %381 = vmatprep.mubr.bf16.mxu0 %v182
  %382 = vmatmul.mubr.bf16.gmra.mxu0 %v181
  %v383 = vpop.f32.mrf.mxu0
  %v384 = vadd.f32 %v345, %v383
  %v385 = vpop.f32.mrf.mxu0
  %v386 = vadd.f32 %v346, %v385
  %v387 = vpop.f32.mrf.mxu0
  %v388 = vpop.f32.mrf.mxu0
  %389 = vdwg.mxu0
  %v390 = vtanh.pop %v384
  %v391 = vtanh.pop %v386
  %s392 = sshll.u32 %s146, 4
  %393 = dma.done %s37, %s392
  %v394 = vld [vmem:[#allocation2 + $0x120] sm:$0xff]
  %v395 = vld [vmem:[#allocation2 + $0x128] sm:$0xff]
  %v396 = vld [vmem:[#allocation2 + $0x130] sm:$0xff]
  %v397 = vld [vmem:[#allocation2 + $0x138] sm:$0xff]
  %v398 = vld [vmem:[#allocation2 + $0x140] sm:$0xff]
  %v399 = vld [vmem:[#allocation2 + $0x148] sm:$0xff]
  %v400 = vld [vmem:[#allocation2 + $0x150] sm:$0xff]
  %v401 = vld [vmem:[#allocation2 + $0x158] sm:$0xff]
  %v402 = vld [vmem:[#allocation2 + $0x160] sm:$0xff]
  %v403 = vld [vmem:[#allocation2 + $0x168] sm:$0xff]
  %v404 = vld [vmem:[#allocation2 + $0x170] sm:$0xff]
  %v405 = vld [vmem:[#allocation2 + $0x178] sm:$0xff]
  %v406 = vld [vmem:[#allocation2 + $0x180] sm:$0xff]
  %v407 = vld [vmem:[#allocation2 + $0x188] sm:$0xff]
  %v408 = vld [vmem:[#allocation2 + $0x190] sm:$0xff]
  %v409 = vld [vmem:[#allocation2 + $0x198] sm:$0xff]
  %v410 = vld [vmem:[#allocation2 + $0x1a0] sm:$0xff]
  %v411 = vld [vmem:[#allocation2 + $0x1a8] sm:$0xff]
  %v412 = vld [vmem:[#allocation2 + $0x1b0] sm:$0xff]
  %v413 = vld [vmem:[#allocation2 + $0x1b8] sm:$0xff]
  %v414 = vld [vmem:[#allocation2 + $0x1c0] sm:$0xff]
  %v415 = vld [vmem:[#allocation2 + $0x1c8] sm:$0xff]
  %v416 = vld [vmem:[#allocation2 + $0x1d0] sm:$0xff]
  %v417 = vld [vmem:[#allocation2 + $0x1d8] sm:$0xff]
  %v418 = vld [vmem:[#allocation2 + $0x1e0] sm:$0xff]
  %v419 = vld [vmem:[#allocation2 + $0x1e8] sm:$0xff]
  %v420 = vld [vmem:[#allocation2 + $0x1f0] sm:$0xff]
  %v421 = vld [vmem:[#allocation2 + $0x1f8] sm:$0xff]
  %v422 = vld [vmem:[#allocation2 + $0x200] sm:$0xff]
  %v423 = vld [vmem:[#allocation2 + $0x208] sm:$0xff]
  %v424 = vld [vmem:[#allocation2 + $0x210] sm:$0xff]
  %v425 = vld [vmem:[#allocation2 + $0x218] sm:$0xff]
  %v426 = vpack.c.bf16 %v390, %v390
  %v427 = vpack.c.bf16 %v391, %v391
  %v460 = vunpack.c.l.b16 %v394
  %v461 = vunpack.c.h.b16 %v394
  %v462 = vunpack.c.l.b16 %v395
  %v463 = vunpack.c.h.b16 %v395
  %v464 = vunpack.c.l.b16 %v396
  %v465 = vunpack.c.h.b16 %v396
  %v466 = vunpack.c.l.b16 %v397
  %v467 = vunpack.c.h.b16 %v397
  %v468 = vunpack.c.l.b16 %v398
  %v469 = vunpack.c.h.b16 %v398
  %v470 = vunpack.c.l.b16 %v399
  %v471 = vunpack.c.h.b16 %v399
  %v472 = vunpack.c.l.b16 %v400
  %v473 = vunpack.c.h.b16 %v400
  %v474 = vunpack.c.l.b16 %v401
  %v475 = vunpack.c.h.b16 %v401
  %v476 = vunpack.c.l.b16 %v402
  %v477 = vunpack.c.h.b16 %v402
  %v478 = vunpack.c.l.b16 %v403
  %v479 = vunpack.c.h.b16 %v403
  %v480 = vunpack.c.l.b16 %v404
  %v481 = vunpack.c.h.b16 %v404
  %v482 = vunpack.c.l.b16 %v405
  %v483 = vunpack.c.h.b16 %v405
  %v484 = vunpack.c.l.b16 %v406
  %v485 = vunpack.c.h.b16 %v406
  %v486 = vunpack.c.l.b16 %v407
  %v487 = vunpack.c.h.b16 %v407
  %v488 = vunpack.c.l.b16 %v408
  %v489 = vunpack.c.h.b16 %v408
  %v490 = vunpack.c.l.b16 %v409
  %v491 = vunpack.c.h.b16 %v409
  %v492 = vunpack.c.l.b16 %v410
  %v493 = vunpack.c.h.b16 %v410
  %v494 = vunpack.c.l.b16 %v411
  %v495 = vunpack.c.h.b16 %v411
  %v496 = vunpack.c.l.b16 %v412
  %v497 = vunpack.c.h.b16 %v412
  %v498 = vunpack.c.l.b16 %v413
  %v499 = vunpack.c.h.b16 %v413
  %v500 = vunpack.c.l.b16 %v414
  %v501 = vunpack.c.h.b16 %v414
  %v502 = vunpack.c.l.b16 %v415
  %v503 = vunpack.c.h.b16 %v415
  %v504 = vunpack.c.l.b16 %v416
  %v505 = vunpack.c.h.b16 %v416
  %v506 = vunpack.c.l.b16 %v417
  %v507 = vunpack.c.h.b16 %v417
  %v508 = vunpack.c.l.b16 %v418
  %v509 = vunpack.c.h.b16 %v418
  %v510 = vunpack.c.l.b16 %v419
  %v511 = vunpack.c.h.b16 %v419
  %v512 = vunpack.c.l.b16 %v420
  %v513 = vunpack.c.h.b16 %v420
  %v514 = vunpack.c.l.b16 %v421
  %v515 = vunpack.c.h.b16 %v421
  %v516 = vunpack.c.l.b16 %v422
  %v517 = vunpack.c.h.b16 %v422
  %v518 = vunpack.c.l.b16 %v423
  %v519 = vunpack.c.h.b16 %v423
  %v520 = vunpack.c.l.b16 %v424
  %v521 = vunpack.c.h.b16 %v424
  %v522 = vunpack.c.l.b16 %v425
  %v523 = vunpack.c.h.b16 %v425
  %v524 = vpack.c.b16 %v462, %v460
  %v525 = vpack.c.b16 %v463, %v461
  %v526 = vpack.c.b16 %v466, %v464
  %v527 = vpack.c.b16 %v467, %v465
  %v528 = vpack.c.b16 %v470, %v468
  %v529 = vpack.c.b16 %v471, %v469
  %v530 = vpack.c.b16 %v474, %v472
  %v531 = vpack.c.b16 %v475, %v473
  %v532 = vpack.c.b16 %v478, %v476
  %v533 = vpack.c.b16 %v479, %v477
  %v534 = vpack.c.b16 %v482, %v480
  %v535 = vpack.c.b16 %v483, %v481
  %v536 = vpack.c.b16 %v486, %v484
  %v537 = vpack.c.b16 %v487, %v485
  %v538 = vpack.c.b16 %v490, %v488
  %v539 = vpack.c.b16 %v491, %v489
  %v540 = vpack.c.b16 %v494, %v492
  %v541 = vpack.c.b16 %v495, %v493
  %v542 = vpack.c.b16 %v498, %v496
  %v543 = vpack.c.b16 %v499, %v497
  %v544 = vpack.c.b16 %v502, %v500
  %v545 = vpack.c.b16 %v503, %v501
  %v546 = vpack.c.b16 %v506, %v504
  %v547 = vpack.c.b16 %v507, %v505
  %v548 = vpack.c.b16 %v510, %v508
  %v549 = vpack.c.b16 %v511, %v509
  %v550 = vpack.c.b16 %v514, %v512
  %v551 = vpack.c.b16 %v515, %v513
  %v552 = vpack.c.b16 %v518, %v516
  %v553 = vpack.c.b16 %v519, %v517
  %v554 = vpack.c.b16 %v522, %v520
  %v555 = vpack.c.b16 %v523, %v521
  %v588 = vrot.slane %v85, 2
  %v589 = vrot.slane %v86, 2
  %592 = vmatprep.subr.bf16.mxu0 %v539
  %593 = vmatpush1.bf16.msra.mxu0 %v538
  %594 = vmatprep.subr.bf16.mxu0 %v537
  %595 = vmatpush1.bf16.msra.mxu0 %v536
  %596 = vmatprep.subr.bf16.mxu0 %v535
  %597 = vmatpush1.bf16.msra.mxu0 %v534
  %598 = vmatprep.subr.bf16.mxu0 %v533
  %599 = vmatpush1.bf16.msra.mxu0 %v532
  %600 = vmatprep.subr.bf16.mxu0 %v531
  %601 = vmatpush1.bf16.msra.mxu0 %v530
  %602 = vmatprep.subr.bf16.mxu0 %v529
  %603 = vmatpush1.bf16.msra.mxu0 %v528
  %604 = vmatprep.subr.bf16.mxu0 %v527
  %605 = vmatpush1.bf16.msra.mxu0 %v526
  %606 = vmatprep.subr.bf16.mxu0 %v525
  %607 = vmatpush1.bf16.msra.mxu0 %v524
  %608 = vmatprep.subr.bf16.mxu0 %v555
  %609 = vmatpush2.bf16.msra.mxu0 %v554
  %610 = vmatprep.subr.bf16.mxu0 %v553
  %611 = vmatpush2.bf16.msra.mxu0 %v552
  %612 = vmatprep.subr.bf16.mxu0 %v551
  %613 = vmatpush2.bf16.msra.mxu0 %v550
  %614 = vmatprep.subr.bf16.mxu0 %v549
  %615 = vmatpush2.bf16.msra.mxu0 %v548
  %616 = vmatprep.subr.bf16.mxu0 %v547
  %617 = vmatpush2.bf16.msra.mxu0 %v546
  %618 = vmatprep.subr.bf16.mxu0 %v545
  %619 = vmatpush2.bf16.msra.mxu0 %v544
  %620 = vmatprep.subr.bf16.mxu0 %v543
  %621 = vmatpush2.bf16.msra.mxu0 %v542
  %622 = vmatprep.subr.bf16.mxu0 %v541
  %623 = vmatpush2.bf16.msra.mxu0 %v540
  %624 = vmatprep.mubr.bf16.mxu0 %v427
  %625 = vmatmul.mubr.bf16.gmra.mxu0 %v426
  %v626 = vpop.f32.mrf.mxu0
  %v627 = vadd.f32 %v588, %v626
  %v628 = vpop.f32.mrf.mxu0
  %v629 = vadd.f32 %v589, %v628
  %v630 = vpop.f32.mrf.mxu0
  %v631 = vpop.f32.mrf.mxu0
  %632 = vdwg.mxu0
  %v633 = vtanh.pop %v627
  %v634 = vtanh.pop %v629
  %s635 = sshll.u32 %s146, 4
  %636 = dma.done %s51, %s635
  %v637 = vld [vmem:[#allocation2 + $0x220] sm:$0xff]
  %v638 = vld [vmem:[#allocation2 + $0x228] sm:$0xff]
  %v639 = vld [vmem:[#allocation2 + $0x230] sm:$0xff]
  %v640 = vld [vmem:[#allocation2 + $0x238] sm:$0xff]
  %v641 = vld [vmem:[#allocation2 + $0x240] sm:$0xff]
  %v642 = vld [vmem:[#allocation2 + $0x248] sm:$0xff]
  %v643 = vld [vmem:[#allocation2 + $0x250] sm:$0xff]
  %v644 = vld [vmem:[#allocation2 + $0x258] sm:$0xff]
  %v645 = vld [vmem:[#allocation2 + $0x260] sm:$0xff]
  %v646 = vld [vmem:[#allocation2 + $0x268] sm:$0xff]
  %v647 = vld [vmem:[#allocation2 + $0x270] sm:$0xff]
  %v648 = vld [vmem:[#allocation2 + $0x278] sm:$0xff]
  %v649 = vld [vmem:[#allocation2 + $0x280] sm:$0xff]
  %v650 = vld [vmem:[#allocation2 + $0x288] sm:$0xff]
  %v651 = vld [vmem:[#allocation2 + $0x290] sm:$0xff]
  %v652 = vld [vmem:[#allocation2 + $0x298] sm:$0xff]
  %v653 = vld [vmem:[#allocation2 + $0x2a0] sm:$0xff]
  %v654 = vld [vmem:[#allocation2 + $0x2a8] sm:$0xff]
  %v655 = vld [vmem:[#allocation2 + $0x2b0] sm:$0xff]
  %v656 = vld [vmem:[#allocation2 + $0x2b8] sm:$0xff]
  %v657 = vld [vmem:[#allocation2 + $0x2c0] sm:$0xff]
  %v658 = vld [vmem:[#allocation2 + $0x2c8] sm:$0xff]
  %v659 = vld [vmem:[#allocation2 + $0x2d0] sm:$0xff]
  %v660 = vld [vmem:[#allocation2 + $0x2d8] sm:$0xff]
  %v661 = vld [vmem:[#allocation2 + $0x2e0] sm:$0xff]
  %v662 = vld [vmem:[#allocation2 + $0x2e8] sm:$0xff]
  %v663 = vld [vmem:[#allocation2 + $0x2f0] sm:$0xff]
  %v664 = vld [vmem:[#allocation2 + $0x2f8] sm:$0xff]
  %v665 = vld [vmem:[#allocation2 + $0x300] sm:$0xff]
  %v666 = vld [vmem:[#allocation2 + $0x308] sm:$0xff]
  %v667 = vld [vmem:[#allocation2 + $0x310] sm:$0xff]
  %v668 = vld [vmem:[#allocation2 + $0x318] sm:$0xff]
  %v669 = vpack.c.bf16 %v633, %v633
  %v670 = vpack.c.bf16 %v634, %v634
  %v703 = vunpack.c.l.b16 %v637
  %v704 = vunpack.c.h.b16 %v637
  %v705 = vunpack.c.l.b16 %v638
  %v706 = vunpack.c.h.b16 %v638
  %v707 = vunpack.c.l.b16 %v639
  %v708 = vunpack.c.h.b16 %v639
  %v709 = vunpack.c.l.b16 %v640
  %v710 = vunpack.c.h.b16 %v640
  %v711 = vunpack.c.l.b16 %v641
  %v712 = vunpack.c.h.b16 %v641
  %v713 = vunpack.c.l.b16 %v642
  %v714 = vunpack.c.h.b16 %v642
  %v715 = vunpack.c.l.b16 %v643
  %v716 = vunpack.c.h.b16 %v643
  %v717 = vunpack.c.l.b16 %v644
  %v718 = vunpack.c.h.b16 %v644
  %v719 = vunpack.c.l.b16 %v645
  %v720 = vunpack.c.h.b16 %v645
  %v721 = vunpack.c.l.b16 %v646
  %v722 = vunpack.c.h.b16 %v646
  %v723 = vunpack.c.l.b16 %v647
  %v724 = vunpack.c.h.b16 %v647
  %v725 = vunpack.c.l.b16 %v648
  %v726 = vunpack.c.h.b16 %v648
  %v727 = vunpack.c.l.b16 %v649
  %v728 = vunpack.c.h.b16 %v649
  %v729 = vunpack.c.l.b16 %v650
  %v730 = vunpack.c.h.b16 %v650
  %v731 = vunpack.c.l.b16 %v651
  %v732 = vunpack.c.h.b16 %v651
  %v733 = vunpack.c.l.b16 %v652
  %v734 = vunpack.c.h.b16 %v652
  %v735 = vunpack.c.l.b16 %v653
  %v736 = vunpack.c.h.b16 %v653
  %v737 = vunpack.c.l.b16 %v654
  %v738 = vunpack.c.h.b16 %v654
  %v739 = vunpack.c.l.b16 %v655
  %v740 = vunpack.c.h.b16 %v655
  %v741 = vunpack.c.l.b16 %v656
  %v742 = vunpack.c.h.b16 %v656
  %v743 = vunpack.c.l.b16 %v657
  %v744 = vunpack.c.h.b16 %v657
  %v745 = vunpack.c.l.b16 %v658
  %v746 = vunpack.c.h.b16 %v658
  %v747 = vunpack.c.l.b16 %v659
  %v748 = vunpack.c.h.b16 %v659
  %v749 = vunpack.c.l.b16 %v660
  %v750 = vunpack.c.h.b16 %v660
  %v751 = vunpack.c.l.b16 %v661
  %v752 = vunpack.c.h.b16 %v661
  %v753 = vunpack.c.l.b16 %v662
  %v754 = vunpack.c.h.b16 %v662
  %v755 = vunpack.c.l.b16 %v663
  %v756 = vunpack.c.h.b16 %v663
  %v757 = vunpack.c.l.b16 %v664
  %v758 = vunpack.c.h.b16 %v664
  %v759 = vunpack.c.l.b16 %v665
  %v760 = vunpack.c.h.b16 %v665
  %v761 = vunpack.c.l.b16 %v666
  %v762 = vunpack.c.h.b16 %v666
  %v763 = vunpack.c.l.b16 %v667
  %v764 = vunpack.c.h.b16 %v667
  %v765 = vunpack.c.l.b16 %v668
  %v766 = vunpack.c.h.b16 %v668
  %v767 = vpack.c.b16 %v705, %v703
  %v768 = vpack.c.b16 %v706, %v704
  %v769 = vpack.c.b16 %v709, %v707
  %v770 = vpack.c.b16 %v710, %v708
  %v771 = vpack.c.b16 %v713, %v711
  %v772 = vpack.c.b16 %v714, %v712
  %v773 = vpack.c.b16 %v717, %v715
  %v774 = vpack.c.b16 %v718, %v716
  %v775 = vpack.c.b16 %v721, %v719
  %v776 = vpack.c.b16 %v722, %v720
  %v777 = vpack.c.b16 %v725, %v723
  %v778 = vpack.c.b16 %v726, %v724
  %v779 = vpack.c.b16 %v729, %v727
  %v780 = vpack.c.b16 %v730, %v728
  %v781 = vpack.c.b16 %v733, %v731
  %v782 = vpack.c.b16 %v734, %v732
  %v783 = vpack.c.b16 %v737, %v735
  %v784 = vpack.c.b16 %v738, %v736
  %v785 = vpack.c.b16 %v741, %v739
  %v786 = vpack.c.b16 %v742, %v740
  %v787 = vpack.c.b16 %v745, %v743
  %v788 = vpack.c.b16 %v746, %v744
  %v789 = vpack.c.b16 %v749, %v747
  %v790 = vpack.c.b16 %v750, %v748
  %v791 = vpack.c.b16 %v753, %v751
  %v792 = vpack.c.b16 %v754, %v752
  %v793 = vpack.c.b16 %v757, %v755
  %v794 = vpack.c.b16 %v758, %v756
  %v795 = vpack.c.b16 %v761, %v759
  %v796 = vpack.c.b16 %v762, %v760
  %v797 = vpack.c.b16 %v765, %v763
  %v798 = vpack.c.b16 %v766, %v764
  %v831 = vrot.slane %v85, 3
  %v832 = vrot.slane %v86, 3
  %835 = vmatprep.subr.bf16.mxu0 %v782
  %836 = vmatpush1.bf16.msra.mxu0 %v781
  %837 = vmatprep.subr.bf16.mxu0 %v780
  %838 = vmatpush1.bf16.msra.mxu0 %v779
  %839 = vmatprep.subr.bf16.mxu0 %v778
  %840 = vmatpush1.bf16.msra.mxu0 %v777
  %841 = vmatprep.subr.bf16.mxu0 %v776
  %842 = vmatpush1.bf16.msra.mxu0 %v775
  %843 = vmatprep.subr.bf16.mxu0 %v774
  %844 = vmatpush1.bf16.msra.mxu0 %v773
  %845 = vmatprep.subr.bf16.mxu0 %v772
  %846 = vmatpush1.bf16.msra.mxu0 %v771
  %847 = vmatprep.subr.bf16.mxu0 %v770
  %848 = vmatpush1.bf16.msra.mxu0 %v769
  %849 = vmatprep.subr.bf16.mxu0 %v768
  %850 = vmatpush1.bf16.msra.mxu0 %v767
  %851 = vmatprep.subr.bf16.mxu0 %v798
  %852 = vmatpush2.bf16.msra.mxu0 %v797
  %853 = vmatprep.subr.bf16.mxu0 %v796
  %854 = vmatpush2.bf16.msra.mxu0 %v795
  %855 = vmatprep.subr.bf16.mxu0 %v794
  %856 = vmatpush2.bf16.msra.mxu0 %v793
  %857 = vmatprep.subr.bf16.mxu0 %v792
  %858 = vmatpush2.bf16.msra.mxu0 %v791
  %859 = vmatprep.subr.bf16.mxu0 %v790
  %860 = vmatpush2.bf16.msra.mxu0 %v789
  %861 = vmatprep.subr.bf16.mxu0 %v788
  %862 = vmatpush2.bf16.msra.mxu0 %v787
  %863 = vmatprep.subr.bf16.mxu0 %v786
  %864 = vmatpush2.bf16.msra.mxu0 %v785
  %865 = vmatprep.subr.bf16.mxu0 %v784
  %866 = vmatpush2.bf16.msra.mxu0 %v783
  %867 = vmatprep.mubr.bf16.mxu0 %v670
  %868 = vmatmul.mubr.bf16.gmra.mxu0 %v669
  %v869 = vpop.f32.mrf.mxu0
  %v870 = vadd.f32 %v831, %v869
  %v871 = vpop.f32.mrf.mxu0
  %v872 = vadd.f32 %v832, %v871
  %v873 = vpop.f32.mrf.mxu0
  %v874 = vpop.f32.mrf.mxu0
  %875 = vdwg.mxu0
  %v876 = vtanh.pop %v870
  %v877 = vtanh.pop %v872
  %s878 = sshll.u32 %s79, 4
  %879 = dma.done %s65, %s878
  %v880 = vld [vmem:[#allocation2 + $0x320] sm:$0xff]
  %v881 = vld [vmem:[#allocation2 + $0x328] sm:$0xff]
  %v882 = vunpack.c.l.bf16 %v880
  %v883 = vunpack.c.h.bf16 %v880
  %v884 = vunpack.c.l.bf16 %v881
  %v885 = vunpack.c.h.bf16 %v881
  %v886 = vld [vmem:[#allocation2 + $0x330] sm:$0xff]
  %v887 = vld [vmem:[#allocation2 + $0x338] sm:$0xff]
  %v888 = vunpack.c.l.bf16 %v886
  %v889 = vunpack.c.l.bf16 %v887
  %v890 = vlaneseq
  %v891 = vshrl.u32 %v890, 7
  %v892 = vsub.s32 0, %v891
  %v893 = vrot.slane %v876, %v892
  %v894 = vlaneseq
  %v895 = vshrl.u32 %v894, 7
  %v896 = vsub.s32 0, %v895
  %v897 = vrot.slane %v877, %v896
  %v898 = vmul.f32 %v882, %v893
  %v899 = vmul.f32 %v883, %v897
  %v900 = vmul.f32 %v884, %v893
  %v901 = vmul.f32 %v885, %v897
  %v902 = vadd.f32 %v898, %v899
  %903 = vadd.xlane.f32.xlu0 %v902
  %v904 = vpop.xlane.xlu0 %903
  %v905 = vadd.f32 %v900, %v901
  %906 = vadd.xlane.f32.xlu0 %v905
  %v907 = vpop.xlane.xlu0 %906
  %v908 = vadd.f32 %v904, %v888
  %v909 = vadd.f32 %v907, %v889
  %v910 = vmul.f32 %v876, %v876
  %v911 = vmul.f32 %v877, %v877
  %v912 = vsub.f32 1.0, %v910
  %v913 = vsub.f32 1.0, %v911
  %v914 = vlaneseq
  %v915 = vshrl.u32 %v914, 7
  %v916 = vsub.s32 0, %v915
  %v917 = vrot.slane %v912, %v916
  %v918 = vlaneseq
  %v919 = vshrl.u32 %v918, 7
  %v920 = vsub.s32 0, %v919
  %v921 = vrot.slane %v913, %v920
  %v922 = vmul.f32 %v882, %v917
  %v923 = vmul.f32 %v883, %v921
  %v924 = vmul.f32 %v884, %v917
  %v925 = vmul.f32 %v885, %v921
  %v926 = vpack.c.bf16 %v924, %v922
  %v927 = vpack.c.bf16 %v925, %v923
  %928 = vmatprep.subr.bf16.mxu0 %v782
  %929 = vmatpush1.bf16.xpose.msra.mxu0 %v781
  %930 = vmatprep.subr.bf16.mxu0 %v780
  %931 = vmatpush1.bf16.xpose.msra.mxu0 %v779
  %932 = vmatprep.subr.bf16.mxu0 %v778
  %933 = vmatpush1.bf16.xpose.msra.mxu0 %v777
  %934 = vmatprep.subr.bf16.mxu0 %v776
  %935 = vmatpush1.bf16.xpose.msra.mxu0 %v775
  %936 = vmatprep.subr.bf16.mxu0 %v774
  %937 = vmatpush1.bf16.xpose.msra.mxu0 %v773
  %938 = vmatprep.subr.bf16.mxu0 %v772
  %939 = vmatpush1.bf16.xpose.msra.mxu0 %v771
  %940 = vmatprep.subr.bf16.mxu0 %v770
  %941 = vmatpush1.bf16.xpose.msra.mxu0 %v769
  %942 = vmatprep.subr.bf16.mxu0 %v768
  %943 = vmatpush1.bf16.xpose.msra.mxu0 %v767
  %944 = vmatprep.subr.bf16.mxu0 %v798
  %945 = vmatpush2.bf16.xpose.msra.mxu0 %v797
  %946 = vmatprep.subr.bf16.mxu0 %v796
  %947 = vmatpush2.bf16.xpose.msra.mxu0 %v795
  %948 = vmatprep.subr.bf16.mxu0 %v794
  %949 = vmatpush2.bf16.xpose.msra.mxu0 %v793
  %950 = vmatprep.subr.bf16.mxu0 %v792
  %951 = vmatpush2.bf16.xpose.msra.mxu0 %v791
  %952 = vmatprep.subr.bf16.mxu0 %v790
  %953 = vmatpush2.bf16.xpose.msra.mxu0 %v789
  %954 = vmatprep.subr.bf16.mxu0 %v788
  %955 = vmatpush2.bf16.xpose.msra.mxu0 %v787
  %956 = vmatprep.subr.bf16.mxu0 %v786
  %957 = vmatpush2.bf16.xpose.msra.mxu0 %v785
  %958 = vmatprep.subr.bf16.mxu0 %v784
  %959 = vmatpush2.bf16.xpose.msra.mxu0 %v783
  %960 = vmatprep.mubr.bf16.mxu0 %v927
  %961 = vmatmul.mubr.bf16.gmra.mxu0 %v926
  %v962 = vpop.f32.mrf.mxu0
  %v963 = vadd.f32 0.0, %v962
  %v964 = vpop.f32.mrf.mxu0
  %v965 = vadd.f32 0.0, %v964
  %v966 = vpop.f32.mrf.mxu0
  %v967 = vadd.f32 0.0, %v966
  %v968 = vpop.f32.mrf.mxu0
  %v969 = vadd.f32 0.0, %v968
  %970 = vdwg.mxu0
  %v971 = vmul.f32 %v633, %v633
  %v972 = vmul.f32 %v634, %v634
  %v973 = vsub.f32 1.0, %v971
  %v974 = vsub.f32 1.0, %v972
  %v975 = vlaneseq
  %v976 = vshrl.u32 %v975, 7
  %v977 = vsub.s32 0, %v976
  %v978 = vrot.slane %v973, %v977
  %v979 = vlaneseq
  %v980 = vshrl.u32 %v979, 7
  %v981 = vsub.s32 0, %v980
  %v982 = vrot.slane %v974, %v981
  %v983 = vmul.f32 %v963, %v978
  %v984 = vmul.f32 %v965, %v982
  %v985 = vmul.f32 %v967, %v978
  %v986 = vmul.f32 %v969, %v982
  %v987 = vpack.c.bf16 %v985, %v983
  %v988 = vpack.c.bf16 %v986, %v984
  %989 = vmatprep.subr.bf16.mxu0 %v539
  %990 = vmatpush1.bf16.xpose.msra.mxu0 %v538
  %991 = vmatprep.subr.bf16.mxu0 %v537
  %992 = vmatpush1.bf16.xpose.msra.mxu0 %v536
  %993 = vmatprep.subr.bf16.mxu0 %v535
  %994 = vmatpush1.bf16.xpose.msra.mxu0 %v534
  %995 = vmatprep.subr.bf16.mxu0 %v533
  %996 = vmatpush1.bf16.xpose.msra.mxu0 %v532
  %997 = vmatprep.subr.bf16.mxu0 %v531
  %998 = vmatpush1.bf16.xpose.msra.mxu0 %v530
  %999 = vmatprep.subr.bf16.mxu0 %v529
  %1000 = vmatpush1.bf16.xpose.msra.mxu0 %v528
  %1001 = vmatprep.subr.bf16.mxu0 %v527
  %1002 = vmatpush1.bf16.xpose.msra.mxu0 %v526
  %1003 = vmatprep.subr.bf16.mxu0 %v525
  %1004 = vmatpush1.bf16.xpose.msra.mxu0 %v524
  %1005 = vmatprep.subr.bf16.mxu0 %v555
  %1006 = vmatpush2.bf16.xpose.msra.mxu0 %v554
  %1007 = vmatprep.subr.bf16.mxu0 %v553
  %1008 = vmatpush2.bf16.xpose.msra.mxu0 %v552
  %1009 = vmatprep.subr.bf16.mxu0 %v551
  %1010 = vmatpush2.bf16.xpose.msra.mxu0 %v550
  %1011 = vmatprep.subr.bf16.mxu0 %v549
  %1012 = vmatpush2.bf16.xpose.msra.mxu0 %v548
  %1013 = vmatprep.subr.bf16.mxu0 %v547
  %1014 = vmatpush2.bf16.xpose.msra.mxu0 %v546
  %1015 = vmatprep.subr.bf16.mxu0 %v545
  %1016 = vmatpush2.bf16.xpose.msra.mxu0 %v544
  %1017 = vmatprep.subr.bf16.mxu0 %v543
  %1018 = vmatpush2.bf16.xpose.msra.mxu0 %v542
  %1019 = vmatprep.subr.bf16.mxu0 %v541
  %1020 = vmatpush2.bf16.xpose.msra.mxu0 %v540
  %1021 = vmatprep.mubr.bf16.mxu0 %v988
  %1022 = vmatmul.mubr.bf16.gmra.mxu0 %v987
  %v1023 = vpop.f32.mrf.mxu0
  %v1024 = vadd.f32 0.0, %v1023
  %v1025 = vpop.f32.mrf.mxu0
  %v1026 = vadd.f32 0.0, %v1025
  %v1027 = vpop.f32.mrf.mxu0
  %v1028 = vadd.f32 0.0, %v1027
  %v1029 = vpop.f32.mrf.mxu0
  %v1030 = vadd.f32 0.0, %v1029
  %1031 = vdwg.mxu0
  %v1032 = vmul.f32 %v390, %v390
  %v1033 = vmul.f32 %v391, %v391
  %v1034 = vsub.f32 1.0, %v1032
  %v1035 = vsub.f32 1.0, %v1033
  %v1036 = vlaneseq
  %v1037 = vshrl.u32 %v1036, 7
  %v1038 = vsub.s32 0, %v1037
  %v1039 = vrot.slane %v1034, %v1038
  %v1040 = vlaneseq
  %v1041 = vshrl.u32 %v1040, 7
  %v1042 = vsub.s32 0, %v1041
  %v1043 = vrot.slane %v1035, %v1042
  %v1044 = vmul.f32 %v1024, %v1039
  %v1045 = vmul.f32 %v1026, %v1043
  %v1046 = vmul.f32 %v1028, %v1039
  %v1047 = vmul.f32 %v1030, %v1043
  %v1048 = vpack.c.bf16 %v1046, %v1044
  %v1049 = vpack.c.bf16 %v1047, %v1045
  %1050 = vmatprep.subr.bf16.mxu0 %v294
  %1051 = vmatpush1.bf16.xpose.msra.mxu0 %v293
  %1052 = vmatprep.subr.bf16.mxu0 %v292
  %1053 = vmatpush1.bf16.xpose.msra.mxu0 %v291
  %1054 = vmatprep.subr.bf16.mxu0 %v290
  %1055 = vmatpush1.bf16.xpose.msra.mxu0 %v289
  %1056 = vmatprep.subr.bf16.mxu0 %v288
  %1057 = vmatpush1.bf16.xpose.msra.mxu0 %v287
  %1058 = vmatprep.subr.bf16.mxu0 %v286
  %1059 = vmatpush1.bf16.xpose.msra.mxu0 %v285
  %1060 = vmatprep.subr.bf16.mxu0 %v284
  %1061 = vmatpush1.bf16.xpose.msra.mxu0 %v283
  %1062 = vmatprep.subr.bf16.mxu0 %v282
  %1063 = vmatpush1.bf16.xpose.msra.mxu0 %v281
  %1064 = vmatprep.subr.bf16.mxu0 %v280
  %1065 = vmatpush1.bf16.xpose.msra.mxu0 %v279
  %1066 = vmatprep.subr.bf16.mxu0 %v310
  %1067 = vmatpush2.bf16.xpose.msra.mxu0 %v309
  %1068 = vmatprep.subr.bf16.mxu0 %v308
  %1069 = vmatpush2.bf16.xpose.msra.mxu0 %v307
  %1070 = vmatprep.subr.bf16.mxu0 %v306
  %1071 = vmatpush2.bf16.xpose.msra.mxu0 %v305
  %1072 = vmatprep.subr.bf16.mxu0 %v304
  %1073 = vmatpush2.bf16.xpose.msra.mxu0 %v303
  %1074 = vmatprep.subr.bf16.mxu0 %v302
  %1075 = vmatpush2.bf16.xpose.msra.mxu0 %v301
  %1076 = vmatprep.subr.bf16.mxu0 %v300
  %1077 = vmatpush2.bf16.xpose.msra.mxu0 %v299
  %1078 = vmatprep.subr.bf16.mxu0 %v298
  %1079 = vmatpush2.bf16.xpose.msra.mxu0 %v297
  %1080 = vmatprep.subr.bf16.mxu0 %v296
  %1081 = vmatpush2.bf16.xpose.msra.mxu0 %v295
  %1082 = vmatprep.mubr.bf16.mxu0 %v1049
  %1083 = vmatmul.mubr.bf16.gmra.mxu0 %v1048
  %v1084 = vpop.f32.mrf.mxu0
  %v1085 = vadd.f32 0.0, %v1084
  %v1086 = vpop.f32.mrf.mxu0
  %v1087 = vadd.f32 0.0, %v1086
  %v1088 = vpop.f32.mrf.mxu0
  %v1089 = vadd.f32 0.0, %v1088
  %v1090 = vpop.f32.mrf.mxu0
  %v1091 = vadd.f32 0.0, %v1090
  %1092 = vdwg.mxu0
  %v1093 = vmul.f32 %v143, %v143
  %v1094 = vmul.f32 %v144, %v144
  %v1095 = vsub.f32 1.0, %v1093
  %v1096 = vsub.f32 1.0, %v1094
  %v1097 = vlaneseq
  %v1098 = vshrl.u32 %v1097, 7
  %v1099 = vsub.s32 0, %v1098
  %v1100 = vrot.slane %v1095, %v1099
  %v1101 = vlaneseq
  %v1102 = vshrl.u32 %v1101, 7
  %v1103 = vsub.s32 0, %v1102
  %v1104 = vrot.slane %v1096, %v1103
  %v1105 = vmul.f32 %v1085, %v1100
  %v1106 = vmul.f32 %v1087, %v1104
  %v1107 = vmul.f32 %v1089, %v1100
  %v1108 = vmul.f32 %v1091, %v1104
  %v1109 = vpack.c.bf16 %v1107, %v1105
  %v1110 = vpack.c.bf16 %v1108, %v1106
  %1111 = vmatprep.subr.bf16.mxu0 0
  %1112 = vmatpush1.bf16.xpose.msra.mxu0 0
  %1113 = vmatprep.subr.bf16.mxu0 0
  %1114 = vmatpush1.bf16.xpose.msra.mxu0 0
  %1115 = vmatprep.subr.bf16.mxu0 0
  %1116 = vmatpush1.bf16.xpose.msra.mxu0 0
  %1117 = vmatprep.subr.bf16.mxu0 0
  %1118 = vmatpush1.bf16.xpose.msra.mxu0 0
  %1119 = vmatprep.subr.bf16.mxu0 0
  %1120 = vmatpush1.bf16.xpose.msra.mxu0 0
  %1121 = vmatprep.subr.bf16.mxu0 0
  %1122 = vmatpush1.bf16.xpose.msra.mxu0 0
  %1123 = vmatprep.subr.bf16.mxu0 0
  %1124 = vmatpush1.bf16.xpose.msra.mxu0 0
  %1125 = vmatprep.subr.bf16.mxu0 %v95
  %1126 = vmatpush1.bf16.xpose.msra.mxu0 %v94
  %1127 = vmatprep.subr.bf16.mxu0 0
  %1128 = vmatpush2.bf16.xpose.msra.mxu0 0
  %1129 = vmatprep.subr.bf16.mxu0 0
  %1130 = vmatpush2.bf16.xpose.msra.mxu0 0
  %1131 = vmatprep.subr.bf16.mxu0 0
  %1132 = vmatpush2.bf16.xpose.msra.mxu0 0
  %1133 = vmatprep.subr.bf16.mxu0 0
  %1134 = vmatpush2.bf16.xpose.msra.mxu0 0
  %1135 = vmatprep.subr.bf16.mxu0 0
  %1136 = vmatpush2.bf16.xpose.msra.mxu0 0
  %1137 = vmatprep.subr.bf16.mxu0 0
  %1138 = vmatpush2.bf16.xpose.msra.mxu0 0
  %1139 = vmatprep.subr.bf16.mxu0 0
  %1140 = vmatpush2.bf16.xpose.msra.mxu0 0
  %1141 = vmatprep.subr.bf16.mxu0 0
  %1142 = vmatpush2.bf16.xpose.msra.mxu0 0
  %1143 = vmatprep.mubr.bf16.mxu0 %v1110
  %1144 = vmatmul.mubr.bf16.gmra.mxu0 %v1109
  %v1145 = vpop.f32.mrf.mxu0
  %v1146 = vadd.f32 0.0, %v1145
  %v1147 = vpop.f32.mrf.mxu0
  %v1148 = vpop.f32.mrf.mxu0
  %v1149 = vadd.f32 0.0, %v1148
  %v1150 = vpop.f32.mrf.mxu0
  %1151 = vdwg.mxu0
  %v1152 = vsub.f32 0.0, %v77
  %v1154 = vlaneseq
  %v1155 = vshrl.u32 %v1154, 7
  %v1156 = vsub.s32 0, %v1155
  %v1157 = vrot.slane %v1152, %v1156
  %1158 = vrot.lane.b32.xlu0 %v1157, 126
  %v1159 = vpop.permute.xlu0 %1158
  %v1161 = vmul.f32 %v1146, %v1159
  %v1162 = vmul.f32 %v1149, %v1159
  %v1164 = vlaneseq
  %v1165 = vshrl.u32 %v1164, 7
  %v1166 = vsub.s32 0, %v1165
  %v1167 = vrot.slane %v77, %v1166
  %1168 = vrot.lane.b32.xlu0 %v1167, 2
  %v1169 = vpop.permute.xlu0 %1168
  %v1171 = vmul.f32 %v1146, %v1169
  %v1172 = vmul.f32 %v1149, %v1169
  %1175 = vrot.lane.b32.xlu0 %v1171, 126
  %v1176 = vpop.permute.xlu0 %1175
  %1177 = vrot.lane.b32.xlu0 %v1172, 126
  %v1178 = vpop.permute.xlu0 %1177
  %v1181 = vadd.f32 %v1161, %v1176
  %v1182 = vadd.f32 %v1162, %v1178
  %v1183 = vmul.f32 %v1181, 96.485
  %v1184 = vmul.f32 %v1182, 96.485
  %vm1185 = vcmask 15360
  %v1186 = vsel %vm1185, %v1183, 0.0
  %v1187 = vsel %vm1185, %v1184, 0.0
  %v1188 = vadd.f32 %v1186, %v1187
  %v1189 = vrot.slane %v1188, 4
  %v1190 = vadd.f32 %v1188, %v1189
  %v1191 = vrot.slane %v1190, 2
  %v1192 = vadd.f32 %v1190, %v1191
  %v1193 = vrot.slane %v1192, 1
  %v1194 = vadd.f32 %v1192, %v1193
  %v1195 = vmul.f32 %v1183, %v1183
  %v1196 = vmul.f32 %v1184, %v1184
  %v1197 = vsel %vm1185, %v1195, 0.0
  %v1198 = vsel %vm1185, %v1196, 0.0
  %v1199 = vadd.f32 %v1197, %v1198
  %v1200 = vrot.slane %v1199, 4
  %v1201 = vadd.f32 %v1199, %v1200
  %v1202 = vrot.slane %v1201, 2
  %v1203 = vadd.f32 %v1201, %v1202
  %v1204 = vrot.slane %v1203, 1
  %v1205 = vadd.f32 %v1203, %v1204
  %v1206 = vrcp.pop 4.0
  %v1207 = vmul.f32 %v1194, %v1206
  %v1208 = vmul.f32 %v1207, 4.0
  %v1209 = vmul.f32 %v1208, %v1207
  %v1210 = vsub.f32 %v1205, %v1209
  %v1211 = vrcp.pop 3.0
  %v1212 = vmul.f32 %v1210, %v1211
  %v1213 = vsel %vm1185, %v1212, 0.0
  %1214 = vadd.xlane.f32.xlu0 %v1213
  %v1215 = vpop.xlane.xlu0 %1214
  %v1216 = vrcp.pop 2.0
  %v1217 = vmul.f32 %v1215, %v1216
  %v1218 = vrsqrt.pop %v1217
  %v1219 = vmul.f32 %v1217, %v1218
  %vm1220 = vcmp.eq.f32.partialorder %v1217, inf
  %v1221 = vsel %vm1220, %v1217, %v1219
  %vm1222 = vcmp.eq.f32.partialorder %v1217, 0.0
  %v1223 = vand.u32 %v1217, 2147483648
  %v1224 = vsel %vm1222, %v1223, %v1221
  %v1225 = vsub.f32 3.0, %v1224
  %v1226 = vfloor.f32 %v1225
  %v1227 = vsub.f32 1.0, %v1225
  %v1228 = vmul.f32 %v1227, 3.1415927
  %v1229 = vand.u32 2147483647, %v1228
  %vm1230 = vcmp.le.f32.partialorder %v1229, 0.7853982
  %vm1231 = vcmp.lt.s32.totalorder %v1228, 0
  %v1232 = vand.u32 %v1228, 2139095040
  %v1233 = vshrl.u32 %v1232, 23
  %v1234 = vsub.s32 %v1233, 127
  %v1235 = vand.u32 2147483647, %v1228
  %v1236 = vand.u32 %v1235, 8388607
  %v1237 = vor.u32 %v1236, 8388608
  %v1238 = vsub.s32 0, %v1237
  %v1239 = vadd.s32 %v1234, 1
  %vm1240 = vcmp.gt.s32.totalorder %v1239, 0
  %v1241 = vsel %vm1240, %v1239, 0
  %v1242 = vshrl.u32 %v1241, 5
  %v1243 = vand.u32 %v1241, 31
  %v1244 = vsub.s32 32, %v1243
  %v1245 = vshrl.u32 683565275, %v1244
  %v1246 = vshll.u32 683565275, %v1243
  %v1247 = vshrl.u32 2475754826, %v1244
  %v1248 = vor.u32 %v1246, %v1247
  %v1249 = vshll.u32 2475754826, %v1243
  %v1250 = vshrl.u32 2131351028, %v1244
  %v1251 = vor.u32 %v1249, %v1250
  %v1252 = vshll.u32 2131351028, %v1243
  %v1253 = vshrl.u32 2102212464, %v1244
  %v1254 = vor.u32 %v1252, %v1253
  %v1255 = vshll.u32 2102212464, %v1243
  %v1256 = vshrl.u32 920167782, %v1244
  %v1257 = vor.u32 %v1255, %v1256
  %v1258 = vshll.u32 920167782, %v1243
  %v1259 = vshrl.u32 1326507024, %v1244
  %v1260 = vor.u32 %v1258, %v1259
  %vm1261 = vcmp.lt.s32.totalorder %v1242, 1
  %vm1262 = vcmp.lt.s32.totalorder %v1242, 2
  %vm1263 = vcmp.lt.s32.totalorder %v1242, 3
  %vm1264 = vcmp.lt.s32.totalorder %v1242, 4
  %v1265 = vsel %vm1261, %v1245, %v1248
  %v1266 = vsel %vm1264, %v1254, 2102212464
  %v1267 = vsel %vm1263, %v1251, %v1266
  %v1268 = vsel %vm1262, %v1265, %v1267
  %v1269 = vsel %vm1261, %v1248, %v1251
  %v1270 = vsel %vm1264, %v1257, 920167782
  %v1271 = vsel %vm1263, %v1254, %v1270
  %v1272 = vsel %vm1262, %v1269, %v1271
  %v1273 = vsel %vm1261, %v1251, %v1254
  %v1274 = vsel %vm1264, %v1260, 1326507024
  %v1275 = vsel %vm1263, %v1257, %v1274
  %v1276 = vsel %vm1262, %v1273, %v1275
  %v1277 = vshll.u32 %v1237, 8
  %v1278 = vmul.u32.u64.compose %v1277, %v1276
  %v1279 = vextract.low.u32 %v1278
  %v1280 = vextract.high.u32 %v1278
  %v1281 = vmul.u32.u64.compose %v1277, %v1272
  %v1282 = vextract.low.u32 %v1281
  %v1283 = vextract.high.u32 %v1281
  %v1284 = vmul.u32 %v1277, %v1268
  %v1285 = vadd.s32 %v1280, %v1282
  %vm1286 = vc.u32 %v1280, %v1282
  %v1287 = vadd.s32 %v1283, 1
  %v1288 = vsel %vm1286, %v1287, %v1283
  %v1289 = vadd.s32 %v1284, %v1288
  %v1290 = vadd.s32 %v1289, 536870912
  %v1291 = vshrl.u32 %v1290, 30
  %v1292 = vshll.u32 %v1291, 30
  %v1293 = vsub.s32 %v1289, %v1292
  %vm1294 = vcmp.lt.s32.totalorder %v1293, 0
  %v1295 = vsub.s32 0, %v1293
  %v1296 = vsel %vm1294, %v1295, %v1293
  %v1297 = vclz %v1296
  %v1298 = vsub.s32 %v1297, 2
  %vm1299 = vcmp.gt.s32.totalorder 0, %v1298
  %v1300 = vsel %vm1299, 0, %v1298
  %v1301 = vsub.s32 32, %v1300
  %v1302 = vshll.u32 %v1293, %v1300
  %v1303 = vshrl.u32 %v1285, %v1301
  %v1304 = vor.u32 %v1302, %v1303
  %v1305 = vsub.s32 4294967266, %v1300
  %v1306 = vadd.s32 %v1305, 127
  %v1307 = vshll.u32 %v1306, 23
  %v1308 = vor.u32 4788187, %v1307
  %v1309 = vand.u32 2147483647, %v1308
  %v1311 = vcvt.s32.f32 %v1304
  %v1312 = vmul.f32 %v1311, %v1309
  %v1313 = vxor.u32 %v1312, 2147483648
  %v1314 = vsel %vm1231, %v1313, %v1312
  %v1315 = vsub.s32 4, %v1291
  %v1316 = vsel %vm1231, %v1315, %v1291
  %v1317 = vsel %vm1230, %v1228, %v1314
  %v1318 = vsel %vm1230, 0, %v1316
  %v1319 = vcosq.f32.pop %v1317
  %v1320 = vsinq.f32.pop %v1317
  %vm1321 = vweird.f32 %v1228
  %v1322 = vand.u32 %v1318, 3
  %vm1323 = vcmp.lt.s32.totalorder %v1322, 2
  %vm1324 = vcmp.eq.s32.totalorder %v1322, 0
  %v1325 = vxor.u32 %v1320, 2147483648
  %v1326 = vsel %vm1324, %v1319, %v1325
  %vm1327 = vcmp.eq.s32.totalorder %v1322, 2
  %v1328 = vxor.u32 %v1319, 2147483648
  %v1329 = vsel %vm1327, %v1328, %v1320
  %v1330 = vsel %vm1323, %v1326, %v1329
  %v1331 = vsel %vm1321, nan, %v1330
  %v1332 = vadd.f32 %v1331, 1.0
  %v1333 = vmul.f32 %v1332, 0.5
  %vm1334 = vcmp.gt.f32.partialorder %v1226, 0.0
  %vm1335 = vcmp.lt.f32.partialorder %v1226, 0.0
  %v1336 = vsel %vm1335, 0.0, %v1333
  %v1337 = vsel %vm1334, 1.0, %v1336
  %vm1338 = vcmask 7168
  %v1339 = vsel %vm1338, %v908, 0.0
  %v1340 = vsel %vm1338, %v909, 0.0
  %v1341 = vadd.f32 %v1339, %v1340
  %v1342 = vrot.slane %v1341, 4
  %v1343 = vadd.f32 %v1341, %v1342
  %v1344 = vrot.slane %v1343, 2
  %v1345 = vadd.f32 %v1343, %v1344
  %v1346 = vrot.slane %v1345, 1
  %v1347 = vadd.f32 %v1345, %v1346
  %v1348 = vmul.f32 %v1347, 24.12125
  %1350 = vrot.lane.b32.xlu0 %v1207, 1
  %v1351 = vpop.permute.xlu0 %1350
  %v1353 = vsel %vm1338, %v1348, %v1351
  %vm1354 = vcmask 23552
  %v1355 = vsel %vm1354, %v1353, 0.0
  %v1356 = vmul.f32 %v1355, %v1337
  %1357 = vst [vmem:[%s2] sm:$0x1] %v1356
  // Predicated region
  $region26: #{_lambda_.1} parent=0 // pred_check
    _
  $region27: #{_lambda_.1} parent=0 // pred_check_branch
    %1359 = sbr.rel (0) target = $region29
  $region28: #{_lambda_.1} parent=0 // pred_region
    _
  $region29: #{_lambda_.1} parent=0 // pred_fallthru
    _
  // Predicated region
  $region30: #{_lambda_.1} parent=0 // pred_check
    _
  $region31: #{_lambda_.1} parent=0 // pred_check_branch
    %1361 = sbr.rel (0) target = $region33
  $region32: #{_lambda_.1} parent=0 // pred_region
    _
  $region33: #{_lambda_.1} parent=0 // pred_fallthru
    _
  %1362 = vsyncmov [#allocation3]
  %s1363 = vpop.sfrf %1362
  %p1364 = scmp.eq.s32.totalorder %s1363, 0
  %p1365 = pneg %p1364
  %1367 = shalt.err (%p1365)
  %s1368 = scalar_lea.sflag [#allocation3], 1
  %1369 = vsyncmov %s1368
  %s1370 = vpop.sfrf %1369
  %p1371 = scmp.eq.s32.totalorder %s1370, 0
  %p1372 = pneg %p1371
  %1374 = shalt.err (%p1372)
  %s1375 = scalar_lea.sflag [#allocation3], 2
  %1376 = vsyncmov %s1375
  %s1377 = vpop.sfrf %1376
  %p1378 = scmp.eq.s32.totalorder %s1377, 0
  %p1379 = pneg %p1378
  %1381 = shalt.err (%p1379)
  %s1382 = scalar_lea.sflag [#allocation3], 3
  %1383 = vsyncmov %s1382
  %s1384 = vpop.sfrf %1383
  %p1385 = scmp.eq.s32.totalorder %s1384, 0
  %p1386 = pneg %p1385
  %1388 = shalt.err (%p1386)
  %s1389 = scalar_lea.sflag [#allocation3], 4
  %1390 = vsyncmov %s1389
  %s1391 = vpop.sfrf %1390
  %p1392 = scmp.eq.s32.totalorder %s1391, 0
  %p1393 = pneg %p1392
  %1395 = shalt.err (%p1393)

</llo_original>
